<compile_context>
chip_gen: v6e
topology: v6e:2x2x1
jax: 0.10.0
libtpu: 0.0.40
codegen_flags: <defaults>
</compile_context>

<pallas_src>
import functools

import jax
import jax.numpy as jnp
from jax.experimental import pallas as pl
from jax.experimental.pallas import tpu as pltpu


def _round_up(x, m):
    return ((x + m - 1) // m) * m


def bilstm_fwd_kernel(x_ref, wih_ref, whh_ref, b_ref, out_ref, h_scr, c_scr,
                      *, t_chunk, hh_p, tail_steps):
    t_idx = pl.program_id(1)
    n_t = pl.num_programs(1)
    bt = x_ref.shape[1]
    h_in = x_ref.shape[2]

    # Init recurrent state once per batch block (time is the innermost grid axis).
    @pl.when(t_idx == 0)
    def _():
        h_scr[...] = jnp.zeros_like(h_scr)
        c_scr[...] = jnp.zeros_like(c_scr)

    wih = wih_ref[...]            # (H, 4*hh_p)     bf16
    whh = whh_ref[...]            # (hh_p, 4*hh_p)  bf16
    b = b_ref[...]                # (1, 4*hh_p)     f32 (sublane-broadcast on add)

    # Batched input projection for the whole chunk: one big GEMM, independent of
    # h, so it sits off the serial recurrence chain. Collapsing (Tt, Bt) is a
    # layout no-op since Bt is a multiple of 8.
    x_all = x_ref[...].reshape(t_chunk * bt, h_in)
    pre_all = jnp.dot(x_all, wih, preferred_element_type=jnp.float32) + b

    def cell(pre, h, c):
        gates = pre + jnp.dot(h.astype(jnp.bfloat16), whh,
                              preferred_element_type=jnp.float32)
        # NOTE: sigmoid -> 0.5*(tanh(0.5*x)+1) is an option if EUP-bound on v5e.
        i = jax.nn.sigmoid(gates[:, 0 * hh_p:1 * hh_p])
        f = jax.nn.sigmoid(gates[:, 1 * hh_p:2 * hh_p])
        g = jnp.tanh(gates[:, 2 * hh_p:3 * hh_p])
        o = jax.nn.sigmoid(gates[:, 3 * hh_p:4 * hh_p])
        c_new = f * c + i * g
        h_new = o * jnp.tanh(c_new)
        return h_new, c_new

    # Fully-unrolled recurrence over the time chunk; h/c stay in vregs.
    h = h_scr[...]
    c = c_scr[...]
    last_chunk = n_t - 1
    for t in range(t_chunk):
        pre = pre_all[t * bt:(t + 1) * bt, :]     # static, sublane-aligned slice
        h_new, c_new = cell(pre, h, c)
        if t < tail_steps:
            # This step index is in-range on every time chunk.
            h, c = h_new, c_new
        else:
            # This step index only runs past T on the final time chunk: mask it
            # there (zero-padded x would still move the state via the biases).
            keep = t_idx != last_chunk
            h = jnp.where(keep, h_new, h)
            c = jnp.where(keep, c_new, c)

    # One scratch write per chunk (not per step) to carry state to next chunk.
    h_scr[...] = h
    c_scr[...] = c

    # Lane-dense (Bt, hh_p) store; the output block is resident across the
    # 'arbitrary' time axis, so the HBM writeback carries the last chunk's h.
    out_ref[...] = h


def bilstm_pooler(x, params):
    """x: (B, T, H) float32  ->  (B, H) float32 (pooled last hidden state)."""
    B, T, H = x.shape
    Hh = H // 2
    wih_f, whh_f, b_f, wih_b, whh_b, b_b = params
    del whh_b  # backward direction starts from zero state at the last step

    hh_p = _round_up(Hh, 128)      # lane-aligned gate blocks
    # NOTE: for production keep Hh % 128 == 0; otherwise the per-gate pad
    # inflates MXU/VPU/EUP work by 128/Hh.

    def pad_gate_cols(w):
        # (rows, 4*Hh) -> (rows, 4*hh_p): each i,f,g,o column block zero-padded
        # to hh_p lanes so every gate slice is a whole-vreg slice. Zero bias
        # padding keeps the padded lanes of h/c exactly zero.
        rows = w.shape[0]
        w4 = w.reshape(rows, 4, Hh)
        w4 = jnp.pad(w4, ((0, 0), (0, 0), (0, hh_p - Hh)))
        return w4.reshape(rows, 4 * hh_p)

    wih_f_p = pad_gate_cols(wih_f).astype(jnp.bfloat16)                  # (H, 4hh_p)
    whh_f_p = jnp.pad(pad_gate_cols(whh_f),
                      ((0, hh_p - Hh), (0, 0))).astype(jnp.bfloat16)     # (hh_p, 4hh_p)
    b_f_p = pad_gate_cols(b_f)                                           # (1, 4hh_p) f32

    # --- Batch tiling: cdiv-style padding, never a single giant tile. ---
    B8 = _round_up(B, 8)
    if B8 <= 64:
        Bt = B8                     # small batch: one block
    elif B8 <= 512:
        Bt = 64                     # >=2 blocks so 'parallel' can shard across 2 TCs (v7x)
    else:
        Bt = 128                    # (Bt=256 is worth sweeping on v6e/v7x for big B)
    B_pad = _round_up(B8, Bt)

    # --- Time tiling: fixed chunk, masked tail (never degrade to Tt=1). ---
    Tt = min(16, T)
    n_tc = pl.cdiv(T, Tt)
    T_pad = n_tc * Tt
    tail_steps = T - (n_tc - 1) * Tt   # valid steps in the final chunk (static)

    # bf16 inputs for the MXU; pad batch/time; time-major layout.
    x_p = jnp.pad(x, ((0, B_pad - B), (0, T_pad - T), (0, 0))).astype(jnp.bfloat16)
    x_tm = jnp.transpose(x_p, (1, 0, 2))                                 # (T_pad, B_pad, H)

    # VMEM budget (double-buffered x / weights + out + scratch + per-chunk
    # working set), with headroom, capped at 48 MiB for v7x safety.
    bytes_x = 2 * Tt * Bt * H * 2
    bytes_w = 2 * ((H + hh_p) * 4 * hh_p * 2 + 4 * hh_p * 4)
    bytes_out = 2 * Bt * hh_p * 4
    bytes_scr = 2 * Bt * hh_p * 4
    bytes_work = (Tt * Bt + 2 * Bt) * 4 * hh_p * 4   # pre_all + gates intermediates
    vmem_limit = max(16 * 1024 * 1024,
                     min(int(1.5 * (bytes_x + bytes_w + bytes_out + bytes_scr
                                    + bytes_work)),
                         48 * 1024 * 1024))

    kernel = functools.partial(bilstm_fwd_kernel, t_chunk=Tt, hh_p=hh_p,
                               tail_steps=tail_steps)

    h_fwd_pad = pl.pallas_call(
        kernel,
        out_shape=jax.ShapeDtypeStruct((B_pad, hh_p), jnp.float32),
        grid_spec=pltpu.PrefetchScalarGridSpec(
            num_scalar_prefetch=0,
            grid=(B_pad // Bt, n_tc),
            in_specs=[
                pl.BlockSpec((Tt, Bt, H), lambda b, t: (t, b, 0)),       # x (time-tiled)
                pl.BlockSpec((H, 4 * hh_p), lambda b, t: (0, 0)),        # Wih fwd
                pl.BlockSpec((hh_p, 4 * hh_p), lambda b, t: (0, 0)),     # Whh fwd
                pl.BlockSpec((1, 4 * hh_p), lambda b, t: (0, 0)),        # b fwd
            ],
            out_specs=pl.BlockSpec((Bt, hh_p), lambda b, t: (b, 0)),
            scratch_shapes=[pltpu.VMEM((Bt, hh_p), jnp.float32),
                            pltpu.VMEM((Bt, hh_p), jnp.float32)],
        ),
        compiler_params=pltpu.CompilerParams(
            dimension_semantics=("parallel", "arbitrary"),
            vmem_limit_bytes=int(vmem_limit),
        ),
    )(x_tm, wih_f_p, whh_f_p, b_f_p)

    h_fwd = h_fwd_pad[:B, :Hh]

    # Backward direction: exact single cell step from zero state on x[:, -1]
    # (Whh_b contributes nothing). Done in plain f32 XLA per review feedback —
    # keeps Wih_b/b_b out of kernel VMEM and the concat out of the store path.
    gates_b = x[:, -1, :] @ wih_b + b_b
    i_b = jax.nn.sigmoid(gates_b[:, 0 * Hh:1 * Hh])
    g_b = jnp.tanh(gates_b[:, 2 * Hh:3 * Hh])
    o_b = jax.nn.sigmoid(gates_b[:, 3 * Hh:4 * Hh])
    h_b = o_b * jnp.tanh(i_b * g_b)                  # f*0 + i*g

    # TODO(synk): nn.Dropout in train mode (scaled random masking) is skipped;
    # eval-mode dropout is identity, which is what is implemented here.
    return jnp.concatenate([h_fwd, h_b], axis=-1)


def init_params(key, hidden_size):
    """Deterministic PyTorch-style LSTM parameter init (uniform ±1/sqrt(Hh)).

    Weights are stored pre-transposed: Wih: (H, 4*Hh), Whh: (Hh, 4*Hh),
    bias: (1, 4*Hh) with b_ih + b_hh already folded together.
    """
    H = hidden_size
    Hh = H // 2
    bound = 1.0 / jnp.sqrt(jnp.float32(Hh))
    keys = jax.random.split(key, 8)

    def u(k, shape):
        return jax.random.uniform(k, shape, jnp.float32, -bound, bound)

    wih_f = u(keys[0], (H, 4 * Hh))
    whh_f = u(keys[1], (Hh, 4 * Hh))
    b_f = u(keys[2], (1, 4 * Hh)) + u(keys[3], (1, 4 * Hh))
    wih_b = u(keys[4], (H, 4 * Hh))
    whh_b = u(keys[5], (Hh, 4 * Hh))
    b_b = u(keys[6], (1, 4 * Hh)) + u(keys[7], (1, 4 * Hh))
    return wih_f, whh_f, b_f, wih_b, whh_b, b_b


def reference_bilstm_pooler(x, params):
    """Pure-JAX f32 reference of the same math, for a sanity check."""
    B, T, H = x.shape
    Hh = H // 2
    wih_f, whh_f, b_f, wih_b, whh_b, b_b = params

    def cell(x_t, h, c, wih, whh, b):
        gates = x_t @ wih + h @ whh + b
        i = jax.nn.sigmoid(gates[:, 0 * Hh:1 * Hh])
        f = jax.nn.sigmoid(gates[:, 1 * Hh:2 * Hh])
        g = jnp.tanh(gates[:, 2 * Hh:3 * Hh])
        o = jax.nn.sigmoid(gates[:, 3 * Hh:4 * Hh])
        c_new = f * c + i * g
        return o * jnp.tanh(c_new), c_new

    h = jnp.zeros((B, Hh), jnp.float32)
    c = jnp.zeros((B, Hh), jnp.float32)
    for t in range(T):
        h, c = cell(x[:, t, :], h, c, wih_f, whh_f, b_f)
    zeros = jnp.zeros((B, Hh), jnp.float32)
    h_b, _ = cell(x[:, T - 1, :], zeros, zeros, wih_b, whh_b, b_b)
    return jnp.concatenate([h, h_b], axis=-1)


if __name__ == "__main__":
    B, T, H = 2, 8, 32          # batch=2, seq=8, hidden=32 (Hh = 16 per direction)
    key = jax.random.PRNGKey(0)
    kx, kp = jax.random.split(key)
    x = jax.random.normal(kx, (B, T, H), jnp.float32)
    params = init_params(kp, H)

    out = jax.block_until_ready(bilstm_pooler(x, params))
    ref = jax.block_until_ready(reference_bilstm_pooler(x, params))

    assert out.shape == (B, H), out.shape
    # bf16 MXU inputs (f32 accumulation) in the forward recurrence vs f32 ref.
    assert jnp.allclose(out, ref, atol=2e-2, rtol=2e-2), (
        f"max abs err {jnp.max(jnp.abs(out - ref))}")
    print("KERNEL_OK")
</pallas_src>

<mosaic_0001>
module attributes {stable_mosaic.version = 11 : i64} {
  func.func @bilstm_fwd_kernel(%arg0: i32, %arg1: i32, %arg2: memref<8x8x32xbf16, #tpu.memory_space<vmem>>, %arg3: memref<32x512xbf16, #tpu.memory_space<vmem>>, %arg4: memref<128x512xbf16, #tpu.memory_space<vmem>>, %arg5: memref<1x512xf32, #tpu.memory_space<vmem>>, %arg6: memref<8x128xf32, #tpu.memory_space<vmem>>, %arg7: memref<8x128xf32, #tpu.memory_space<vmem>>, %arg8: memref<8x128xf32, #tpu.memory_space<vmem>>) attributes {dimension_semantics = [#tpu.dimension_semantics<parallel>, #tpu.dimension_semantics<arbitrary>], iteration_bounds = array<i64: 1, 1>, scalar_prefetch = 0 : i64, scratch_operands = 2 : i64, tpu.core_type = #tpu.core_type<tc>, window_params = [{transform_indices = @transform_0, window_bounds = array<i64: 8, 8, 32>}, {pipeline_mode = #tpu.pipeline_mode<synchronous>, transform_indices = @transform_1, window_bounds = array<i64: 32, 512>}, {pipeline_mode = #tpu.pipeline_mode<synchronous>, transform_indices = @transform_2, window_bounds = array<i64: 128, 512>}, {pipeline_mode = #tpu.pipeline_mode<synchronous>, transform_indices = @transform_3, window_bounds = array<i64: 1, 512>}, {transform_indices = @transform_4, window_bounds = array<i64: 8, 128>}]} {
    %c0_i32 = arith.constant 0 : i32
    %0 = arith.cmpi eq, %arg1, %c0_i32 : i32
    %1 = arith.extui %0 : i1 to i32
    %c0_i32_0 = arith.constant 0 : i32
    %2 = arith.cmpi ne, %1, %c0_i32_0 : i32
    scf.if %2 {
      %cst_51 = arith.constant 0.000000e+00 : f32
      %248 = vector.broadcast %cst_51 : f32 to vector<8x128xf32>
      %c0_52 = arith.constant 0 : index
      %c0_53 = arith.constant 0 : index
      %249 = vector.load %arg7[%c0_52, %c0_53] : memref<8x128xf32, #tpu.memory_space<vmem>>, vector<8x128xf32>
      tpu.vector_store %arg7[%c0_52, %c0_53], %248 {strides = array<i32>} : memref<8x128xf32, #tpu.memory_space<vmem>>, vector<8x128xf32>,
      %cst_54 = arith.constant 0.000000e+00 : f32
      %250 = vector.broadcast %cst_54 : f32 to vector<8x128xf32>
      %c0_55 = arith.constant 0 : index
      %c0_56 = arith.constant 0 : index
      %251 = vector.load %arg8[%c0_55, %c0_56] : memref<8x128xf32, #tpu.memory_space<vmem>>, vector<8x128xf32>
      tpu.vector_store %arg8[%c0_55, %c0_56], %250 {strides = array<i32>} : memref<8x128xf32, #tpu.memory_space<vmem>>, vector<8x128xf32>,
    } else {
    }
    %c0 = arith.constant 0 : index
    %c0_1 = arith.constant 0 : index
    %3 = vector.load %arg3[%c0, %c0_1] : memref<32x512xbf16, #tpu.memory_space<vmem>>, vector<32x512xbf16>
    %c0_2 = arith.constant 0 : index
    %c0_3 = arith.constant 0 : index
    %4 = vector.load %arg4[%c0_2, %c0_3] : memref<128x512xbf16, #tpu.memory_space<vmem>>, vector<128x512xbf16>
    %c0_4 = arith.constant 0 : index
    %c0_5 = arith.constant 0 : index
    %5 = vector.load %arg5[%c0_4, %c0_5] : memref<1x512xf32, #tpu.memory_space<vmem>>, vector<1x512xf32>
    %c0_6 = arith.constant 0 : index
    %c0_7 = arith.constant 0 : index
    %c0_8 = arith.constant 0 : index
    %6 = vector.load %arg2[%c0_6, %c0_7, %c0_8] : memref<8x8x32xbf16, #tpu.memory_space<vmem>>, vector<8x8x32xbf16>
    %7 = vector.shape_cast %6 : vector<8x8x32xbf16> to vector<64x32xbf16>
    %cst = arith.constant dense<0.000000e+00> : vector<64x512xf32>
    %8 = tpu.matmul %7, %3, %cst {dimension_numbers = #tpu.dot_dimension_numbers<[1], [0], [0], [1], [0, 0, 1, 1], [], []>} : vector<64x32xbf16>, vector<32x512xbf16>, vector<64x512xf32> -> vector<64x512xf32>
    %9 = vector.broadcast %5 : vector<1x512xf32> to vector<64x512xf32>
    %10 = arith.addf %8, %9 : vector<64x512xf32>
    %c0_9 = arith.constant 0 : index
    %c0_10 = arith.constant 0 : index
    %11 = vector.load %arg7[%c0_9, %c0_10] : memref<8x128xf32, #tpu.memory_space<vmem>>, vector<8x128xf32>
    %c0_11 = arith.constant 0 : index
    %c0_12 = arith.constant 0 : index
    %12 = vector.load %arg8[%c0_11, %c0_12] : memref<8x128xf32, #tpu.memory_space<vmem>>, vector<8x128xf32>
    %13 = vector.extract_strided_slice %10 {offsets = [0, 0], sizes = [8, 512], strides = [1, 1]} : vector<64x512xf32> to vector<8x512xf32>
    %14 = arith.truncf %11 : vector<8x128xf32> to vector<8x128xbf16>
    %cst_13 = arith.constant dense<0.000000e+00> : vector<8x512xf32>
    %15 = tpu.matmul %14, %4, %cst_13 {dimension_numbers = #tpu.dot_dimension_numbers<[1], [0], [0], [1], [0, 0, 1, 1], [], []>} : vector<8x128xbf16>, vector<128x512xbf16>, vector<8x512xf32> -> vector<8x512xf32>
    %16 = arith.addf %13, %15 : vector<8x512xf32>
    %17 = vector.extract_strided_slice %16 {offsets = [0, 0], sizes = [8, 128], strides = [1, 1]} : vector<8x512xf32> to vector<8x128xf32>
    %18 = arith.negf %17 : vector<8x128xf32>
    %19 = math.exp %18 : vector<8x128xf32>
    %cst_14 = arith.constant 1.000000e+00 : f32
    %20 = vector.broadcast %cst_14 : f32 to vector<8x128xf32>
    %21 = arith.addf %20, %19 : vector<8x128xf32>
    %22 = arith.divf %20, %21 : vector<8x128xf32>
    %23 = vector.extract_strided_slice %16 {offsets = [0, 128], sizes = [8, 128], strides = [1, 1]} : vector<8x512xf32> to vector<8x128xf32>
    %24 = arith.negf %23 : vector<8x128xf32>
    %25 = math.exp %24 : vector<8x128xf32>
    %cst_15 = arith.constant 1.000000e+00 : f32
    %26 = vector.broadcast %cst_15 : f32 to vector<8x128xf32>
    %27 = arith.addf %26, %25 : vector<8x128xf32>
    %28 = arith.divf %26, %27 : vector<8x128xf32>
    %29 = vector.extract_strided_slice %16 {offsets = [0, 256], sizes = [8, 128], strides = [1, 1]} : vector<8x512xf32> to vector<8x128xf32>
    %30 = math.tanh %29 : vector<8x128xf32>
    %31 = vector.extract_strided_slice %16 {offsets = [0, 384], sizes = [8, 128], strides = [1, 1]} : vector<8x512xf32> to vector<8x128xf32>
    %32 = arith.negf %31 : vector<8x128xf32>
    %33 = math.exp %32 : vector<8x128xf32>
    %cst_16 = arith.constant 1.000000e+00 : f32
    %34 = vector.broadcast %cst_16 : f32 to vector<8x128xf32>
    %35 = arith.addf %34, %33 : vector<8x128xf32>
    %36 = arith.divf %34, %35 : vector<8x128xf32>
    %37 = arith.mulf %28, %12 : vector<8x128xf32>
    %38 = arith.mulf %22, %30 : vector<8x128xf32>
    %39 = arith.addf %37, %38 : vector<8x128xf32>
    %40 = math.tanh %39 : vector<8x128xf32>
    %41 = arith.mulf %36, %40 : vector<8x128xf32>
    %42 = vector.extract_strided_slice %10 {offsets = [8, 0], sizes = [8, 512], strides = [1, 1]} : vector<64x512xf32> to vector<8x512xf32>
    %43 = arith.truncf %41 : vector<8x128xf32> to vector<8x128xbf16>
    %cst_17 = arith.constant dense<0.000000e+00> : vector<8x512xf32>
    %44 = tpu.matmul %43, %4, %cst_17 {dimension_numbers = #tpu.dot_dimension_numbers<[1], [0], [0], [1], [0, 0, 1, 1], [], []>} : vector<8x128xbf16>, vector<128x512xbf16>, vector<8x512xf32> -> vector<8x512xf32>
    %45 = arith.addf %42, %44 : vector<8x512xf32>
    %46 = vector.extract_strided_slice %45 {offsets = [0, 0], sizes = [8, 128], strides = [1, 1]} : vector<8x512xf32> to vector<8x128xf32>
    %47 = arith.negf %46 : vector<8x128xf32>
    %48 = math.exp %47 : vector<8x128xf32>
    %cst_18 = arith.constant 1.000000e+00 : f32
    %49 = vector.broadcast %cst_18 : f32 to vector<8x128xf32>
    %50 = arith.addf %49, %48 : vector<8x128xf32>
    %51 = arith.divf %49, %50 : vector<8x128xf32>
    %52 = vector.extract_strided_slice %45 {offsets = [0, 128], sizes = [8, 128], strides = [1, 1]} : vector<8x512xf32> to vector<8x128xf32>
    %53 = arith.negf %52 : vector<8x128xf32>
    %54 = math.exp %53 : vector<8x128xf32>
    %cst_19 = arith.constant 1.000000e+00 : f32
    %55 = vector.broadcast %cst_19 : f32 to vector<8x128xf32>
    %56 = arith.addf %55, %54 : vector<8x128xf32>
    %57 = arith.divf %55, %56 : vector<8x128xf32>
    %58 = vector.extract_strided_slice %45 {offsets = [0, 256], sizes = [8, 128], strides = [1, 1]} : vector<8x512xf32> to vector<8x128xf32>
    %59 = math.tanh %58 : vector<8x128xf32>
    %60 = vector.extract_strided_slice %45 {offsets = [0, 384], sizes = [8, 128], strides = [1, 1]} : vector<8x512xf32> to vector<8x128xf32>
    %61 = arith.negf %60 : vector<8x128xf32>
    %62 = math.exp %61 : vector<8x128xf32>
    %cst_20 = arith.constant 1.000000e+00 : f32
    %63 = vector.broadcast %cst_20 : f32 to vector<8x128xf32>
    %64 = arith.addf %63, %62 : vector<8x128xf32>
    %65 = arith.divf %63, %64 : vector<8x128xf32>
    %66 = arith.mulf %57, %39 : vector<8x128xf32>
    %67 = arith.mulf %51, %59 : vector<8x128xf32>
    %68 = arith.addf %66, %67 : vector<8x128xf32>
    %69 = math.tanh %68 : vector<8x128xf32>
    %70 = arith.mulf %65, %69 : vector<8x128xf32>
    %71 = vector.extract_strided_slice %10 {offsets = [16, 0], sizes = [8, 512], strides = [1, 1]} : vector<64x512xf32> to vector<8x512xf32>
    %72 = arith.truncf %70 : vector<8x128xf32> to vector<8x128xbf16>
    %cst_21 = arith.constant dense<0.000000e+00> : vector<8x512xf32>
    %73 = tpu.matmul %72, %4, %cst_21 {dimension_numbers = #tpu.dot_dimension_numbers<[1], [0], [0], [1], [0, 0, 1, 1], [], []>} : vector<8x128xbf16>, vector<128x512xbf16>, vector<8x512xf32> -> vector<8x512xf32>
    %74 = arith.addf %71, %73 : vector<8x512xf32>
    %75 = vector.extract_strided_slice %74 {offsets = [0, 0], sizes = [8, 128], strides = [1, 1]} : vector<8x512xf32> to vector<8x128xf32>
    %76 = arith.negf %75 : vector<8x128xf32>
    %77 = math.exp %76 : vector<8x128xf32>
    %cst_22 = arith.constant 1.000000e+00 : f32
    %78 = vector.broadcast %cst_22 : f32 to vector<8x128xf32>
    %79 = arith.addf %78, %77 : vector<8x128xf32>
    %80 = arith.divf %78, %79 : vector<8x128xf32>
    %81 = vector.extract_strided_slice %74 {offsets = [0, 128], sizes = [8, 128], strides = [1, 1]} : vector<8x512xf32> to vector<8x128xf32>
    %82 = arith.negf %81 : vector<8x128xf32>
    %83 = math.exp %82 : vector<8x128xf32>
    %cst_23 = arith.constant 1.000000e+00 : f32
    %84 = vector.broadcast %cst_23 : f32 to vector<8x128xf32>
    %85 = arith.addf %84, %83 : vector<8x128xf32>
    %86 = arith.divf %84, %85 : vector<8x128xf32>
    %87 = vector.extract_strided_slice %74 {offsets = [0, 256], sizes = [8, 128], strides = [1, 1]} : vector<8x512xf32> to vector<8x128xf32>
    %88 = math.tanh %87 : vector<8x128xf32>
    %89 = vector.extract_strided_slice %74 {offsets = [0, 384], sizes = [8, 128], strides = [1, 1]} : vector<8x512xf32> to vector<8x128xf32>
    %90 = arith.negf %89 : vector<8x128xf32>
    %91 = math.exp %90 : vector<8x128xf32>
    %cst_24 = arith.constant 1.000000e+00 : f32
    %92 = vector.broadcast %cst_24 : f32 to vector<8x128xf32>
    %93 = arith.addf %92, %91 : vector<8x128xf32>
    %94 = arith.divf %92, %93 : vector<8x128xf32>
    %95 = arith.mulf %86, %68 : vector<8x128xf32>
    %96 = arith.mulf %80, %88 : vector<8x128xf32>
    %97 = arith.addf %95, %96 : vector<8x128xf32>
    %98 = math.tanh %97 : vector<8x128xf32>
    %99 = arith.mulf %94, %98 : vector<8x128xf32>
    %100 = vector.extract_strided_slice %10 {offsets = [24, 0], sizes = [8, 512], strides = [1, 1]} : vector<64x512xf32> to vector<8x512xf32>
    %101 = arith.truncf %99 : vector<8x128xf32> to vector<8x128xbf16>
    %cst_25 = arith.constant dense<0.000000e+00> : vector<8x512xf32>
    %102 = tpu.matmul %101, %4, %cst_25 {dimension_numbers = #tpu.dot_dimension_numbers<[1], [0], [0], [1], [0, 0, 1, 1], [], []>} : vector<8x128xbf16>, vector<128x512xbf16>, vector<8x512xf32> -> vector<8x512xf32>
    %103 = arith.addf %100, %102 : vector<8x512xf32>
    %104 = vector.extract_strided_slice %103 {offsets = [0, 0], sizes = [8, 128], strides = [1, 1]} : vector<8x512xf32> to vector<8x128xf32>
    %105 = arith.negf %104 : vector<8x128xf32>
    %106 = math.exp %105 : vector<8x128xf32>
    %cst_26 = arith.constant 1.000000e+00 : f32
    %107 = vector.broadcast %cst_26 : f32 to vector<8x128xf32>
    %108 = arith.addf %107, %106 : vector<8x128xf32>
    %109 = arith.divf %107, %108 : vector<8x128xf32>
    %110 = vector.extract_strided_slice %103 {offsets = [0, 128], sizes = [8, 128], strides = [1, 1]} : vector<8x512xf32> to vector<8x128xf32>
    %111 = arith.negf %110 : vector<8x128xf32>
    %112 = math.exp %111 : vector<8x128xf32>
    %cst_27 = arith.constant 1.000000e+00 : f32
    %113 = vector.broadcast %cst_27 : f32 to vector<8x128xf32>
    %114 = arith.addf %113, %112 : vector<8x128xf32>
    %115 = arith.divf %113, %114 : vector<8x128xf32>
    %116 = vector.extract_strided_slice %103 {offsets = [0, 256], sizes = [8, 128], strides = [1, 1]} : vector<8x512xf32> to vector<8x128xf32>
    %117 = math.tanh %116 : vector<8x128xf32>
    %118 = vector.extract_strided_slice %103 {offsets = [0, 384], sizes = [8, 128], strides = [1, 1]} : vector<8x512xf32> to vector<8x128xf32>
    %119 = arith.negf %118 : vector<8x128xf32>
    %120 = math.exp %119 : vector<8x128xf32>
    %cst_28 = arith.constant 1.000000e+00 : f32
    %121 = vector.broadcast %cst_28 : f32 to vector<8x128xf32>
    %122 = arith.addf %121, %120 : vector<8x128xf32>
    %123 = arith.divf %121, %122 : vector<8x128xf32>
    %124 = arith.mulf %115, %97 : vector<8x128xf32>
    %125 = arith.mulf %109, %117 : vector<8x128xf32>
    %126 = arith.addf %124, %125 : vector<8x128xf32>
    %127 = math.tanh %126 : vector<8x128xf32>
    %128 = arith.mulf %123, %127 : vector<8x128xf32>
    %129 = vector.extract_strided_slice %10 {offsets = [32, 0], sizes = [8, 512], strides = [1, 1]} : vector<64x512xf32> to vector<8x512xf32>
    %130 = arith.truncf %128 : vector<8x128xf32> to vector<8x128xbf16>
    %cst_29 = arith.constant dense<0.000000e+00> : vector<8x512xf32>
    %131 = tpu.matmul %130, %4, %cst_29 {dimension_numbers = #tpu.dot_dimension_numbers<[1], [0], [0], [1], [0, 0, 1, 1], [], []>} : vector<8x128xbf16>, vector<128x512xbf16>, vector<8x512xf32> -> vector<8x512xf32>
    %132 = arith.addf %129, %131 : vector<8x512xf32>
    %133 = vector.extract_strided_slice %132 {offsets = [0, 0], sizes = [8, 128], strides = [1, 1]} : vector<8x512xf32> to vector<8x128xf32>
    %134 = arith.negf %133 : vector<8x128xf32>
    %135 = math.exp %134 : vector<8x128xf32>
    %cst_30 = arith.constant 1.000000e+00 : f32
    %136 = vector.broadcast %cst_30 : f32 to vector<8x128xf32>
    %137 = arith.addf %136, %135 : vector<8x128xf32>
    %138 = arith.divf %136, %137 : vector<8x128xf32>
    %139 = vector.extract_strided_slice %132 {offsets = [0, 128], sizes = [8, 128], strides = [1, 1]} : vector<8x512xf32> to vector<8x128xf32>
    %140 = arith.negf %139 : vector<8x128xf32>
    %141 = math.exp %140 : vector<8x128xf32>
    %cst_31 = arith.constant 1.000000e+00 : f32
    %142 = vector.broadcast %cst_31 : f32 to vector<8x128xf32>
    %143 = arith.addf %142, %141 : vector<8x128xf32>
    %144 = arith.divf %142, %143 : vector<8x128xf32>
    %145 = vector.extract_strided_slice %132 {offsets = [0, 256], sizes = [8, 128], strides = [1, 1]} : vector<8x512xf32> to vector<8x128xf32>
    %146 = math.tanh %145 : vector<8x128xf32>
    %147 = vector.extract_strided_slice %132 {offsets = [0, 384], sizes = [8, 128], strides = [1, 1]} : vector<8x512xf32> to vector<8x128xf32>
    %148 = arith.negf %147 : vector<8x128xf32>
    %149 = math.exp %148 : vector<8x128xf32>
    %cst_32 = arith.constant 1.000000e+00 : f32
    %150 = vector.broadcast %cst_32 : f32 to vector<8x128xf32>
    %151 = arith.addf %150, %149 : vector<8x128xf32>
    %152 = arith.divf %150, %151 : vector<8x128xf32>
    %153 = arith.mulf %144, %126 : vector<8x128xf32>
    %154 = arith.mulf %138, %146 : vector<8x128xf32>
    %155 = arith.addf %153, %154 : vector<8x128xf32>
    %156 = math.tanh %155 : vector<8x128xf32>
    %157 = arith.mulf %152, %156 : vector<8x128xf32>
    %158 = vector.extract_strided_slice %10 {offsets = [40, 0], sizes = [8, 512], strides = [1, 1]} : vector<64x512xf32> to vector<8x512xf32>
    %159 = arith.truncf %157 : vector<8x128xf32> to vector<8x128xbf16>
    %cst_33 = arith.constant dense<0.000000e+00> : vector<8x512xf32>
    %160 = tpu.matmul %159, %4, %cst_33 {dimension_numbers = #tpu.dot_dimension_numbers<[1], [0], [0], [1], [0, 0, 1, 1], [], []>} : vector<8x128xbf16>, vector<128x512xbf16>, vector<8x512xf32> -> vector<8x512xf32>
    %161 = arith.addf %158, %160 : vector<8x512xf32>
    %162 = vector.extract_strided_slice %161 {offsets = [0, 0], sizes = [8, 128], strides = [1, 1]} : vector<8x512xf32> to vector<8x128xf32>
    %163 = arith.negf %162 : vector<8x128xf32>
    %164 = math.exp %163 : vector<8x128xf32>
    %cst_34 = arith.constant 1.000000e+00 : f32
    %165 = vector.broadcast %cst_34 : f32 to vector<8x128xf32>
    %166 = arith.addf %165, %164 : vector<8x128xf32>
    %167 = arith.divf %165, %166 : vector<8x128xf32>
    %168 = vector.extract_strided_slice %161 {offsets = [0, 128], sizes = [8, 128], strides = [1, 1]} : vector<8x512xf32> to vector<8x128xf32>
    %169 = arith.negf %168 : vector<8x128xf32>
    %170 = math.exp %169 : vector<8x128xf32>
    %cst_35 = arith.constant 1.000000e+00 : f32
    %171 = vector.broadcast %cst_35 : f32 to vector<8x128xf32>
    %172 = arith.addf %171, %170 : vector<8x128xf32>
    %173 = arith.divf %171, %172 : vector<8x128xf32>
    %174 = vector.extract_strided_slice %161 {offsets = [0, 256], sizes = [8, 128], strides = [1, 1]} : vector<8x512xf32> to vector<8x128xf32>
    %175 = math.tanh %174 : vector<8x128xf32>
    %176 = vector.extract_strided_slice %161 {offsets = [0, 384], sizes = [8, 128], strides = [1, 1]} : vector<8x512xf32> to vector<8x128xf32>
    %177 = arith.negf %176 : vector<8x128xf32>
    %178 = math.exp %177 : vector<8x128xf32>
    %cst_36 = arith.constant 1.000000e+00 : f32
    %179 = vector.broadcast %cst_36 : f32 to vector<8x128xf32>
    %180 = arith.addf %179, %178 : vector<8x128xf32>
    %181 = arith.divf %179, %180 : vector<8x128xf32>
    %182 = arith.mulf %173, %155 : vector<8x128xf32>
    %183 = arith.mulf %167, %175 : vector<8x128xf32>
    %184 = arith.addf %182, %183 : vector<8x128xf32>
    %185 = math.tanh %184 : vector<8x128xf32>
    %186 = arith.mulf %181, %185 : vector<8x128xf32>
    %187 = vector.extract_strided_slice %10 {offsets = [48, 0], sizes = [8, 512], strides = [1, 1]} : vector<64x512xf32> to vector<8x512xf32>
    %188 = arith.truncf %186 : vector<8x128xf32> to vector<8x128xbf16>
    %cst_37 = arith.constant dense<0.000000e+00> : vector<8x512xf32>
    %189 = tpu.matmul %188, %4, %cst_37 {dimension_numbers = #tpu.dot_dimension_numbers<[1], [0], [0], [1], [0, 0, 1, 1], [], []>} : vector<8x128xbf16>, vector<128x512xbf16>, vector<8x512xf32> -> vector<8x512xf32>
    %190 = arith.addf %187, %189 : vector<8x512xf32>
    %191 = vector.extract_strided_slice %190 {offsets = [0, 0], sizes = [8, 128], strides = [1, 1]} : vector<8x512xf32> to vector<8x128xf32>
    %192 = arith.negf %191 : vector<8x128xf32>
    %193 = math.exp %192 : vector<8x128xf32>
    %cst_38 = arith.constant 1.000000e+00 : f32
    %194 = vector.broadcast %cst_38 : f32 to vector<8x128xf32>
    %195 = arith.addf %194, %193 : vector<8x128xf32>
    %196 = arith.divf %194, %195 : vector<8x128xf32>
    %197 = vector.extract_strided_slice %190 {offsets = [0, 128], sizes = [8, 128], strides = [1, 1]} : vector<8x512xf32> to vector<8x128xf32>
    %198 = arith.negf %197 : vector<8x128xf32>
    %199 = math.exp %198 : vector<8x128xf32>
    %cst_39 = arith.constant 1.000000e+00 : f32
    %200 = vector.broadcast %cst_39 : f32 to vector<8x128xf32>
    %201 = arith.addf %200, %199 : vector<8x128xf32>
    %202 = arith.divf %200, %201 : vector<8x128xf32>
    %203 = vector.extract_strided_slice %190 {offsets = [0, 256], sizes = [8, 128], strides = [1, 1]} : vector<8x512xf32> to vector<8x128xf32>
    %204 = math.tanh %203 : vector<8x128xf32>
    %205 = vector.extract_strided_slice %190 {offsets = [0, 384], sizes = [8, 128], strides = [1, 1]} : vector<8x512xf32> to vector<8x128xf32>
    %206 = arith.negf %205 : vector<8x128xf32>
    %207 = math.exp %206 : vector<8x128xf32>
    %cst_40 = arith.constant 1.000000e+00 : f32
    %208 = vector.broadcast %cst_40 : f32 to vector<8x128xf32>
    %209 = arith.addf %208, %207 : vector<8x128xf32>
    %210 = arith.divf %208, %209 : vector<8x128xf32>
    %211 = arith.mulf %202, %184 : vector<8x128xf32>
    %212 = arith.mulf %196, %204 : vector<8x128xf32>
    %213 = arith.addf %211, %212 : vector<8x128xf32>
    %214 = math.tanh %213 : vector<8x128xf32>
    %215 = arith.mulf %210, %214 : vector<8x128xf32>
    %216 = vector.extract_strided_slice %10 {offsets = [56, 0], sizes = [8, 512], strides = [1, 1]} : vector<64x512xf32> to vector<8x512xf32>
    %217 = arith.truncf %215 : vector<8x128xf32> to vector<8x128xbf16>
    %cst_41 = arith.constant dense<0.000000e+00> : vector<8x512xf32>
    %218 = tpu.matmul %217, %4, %cst_41 {dimension_numbers = #tpu.dot_dimension_numbers<[1], [0], [0], [1], [0, 0, 1, 1], [], []>} : vector<8x128xbf16>, vector<128x512xbf16>, vector<8x512xf32> -> vector<8x512xf32>
    %219 = arith.addf %216, %218 : vector<8x512xf32>
    %220 = vector.extract_strided_slice %219 {offsets = [0, 0], sizes = [8, 128], strides = [1, 1]} : vector<8x512xf32> to vector<8x128xf32>
    %221 = arith.negf %220 : vector<8x128xf32>
    %222 = math.exp %221 : vector<8x128xf32>
    %cst_42 = arith.constant 1.000000e+00 : f32
    %223 = vector.broadcast %cst_42 : f32 to vector<8x128xf32>
    %224 = arith.addf %223, %222 : vector<8x128xf32>
    %225 = arith.divf %223, %224 : vector<8x128xf32>
    %226 = vector.extract_strided_slice %219 {offsets = [0, 128], sizes = [8, 128], strides = [1, 1]} : vector<8x512xf32> to vector<8x128xf32>
    %227 = arith.negf %226 : vector<8x128xf32>
    %228 = math.exp %227 : vector<8x128xf32>
    %cst_43 = arith.constant 1.000000e+00 : f32
    %229 = vector.broadcast %cst_43 : f32 to vector<8x128xf32>
    %230 = arith.addf %229, %228 : vector<8x128xf32>
    %231 = arith.divf %229, %230 : vector<8x128xf32>
    %232 = vector.extract_strided_slice %219 {offsets = [0, 256], sizes = [8, 128], strides = [1, 1]} : vector<8x512xf32> to vector<8x128xf32>
    %233 = math.tanh %232 : vector<8x128xf32>
    %234 = vector.extract_strided_slice %219 {offsets = [0, 384], sizes = [8, 128], strides = [1, 1]} : vector<8x512xf32> to vector<8x128xf32>
    %235 = arith.negf %234 : vector<8x128xf32>
    %236 = math.exp %235 : vector<8x128xf32>
    %cst_44 = arith.constant 1.000000e+00 : f32
    %237 = vector.broadcast %cst_44 : f32 to vector<8x128xf32>
    %238 = arith.addf %237, %236 : vector<8x128xf32>
    %239 = arith.divf %237, %238 : vector<8x128xf32>
    %240 = arith.mulf %231, %213 : vector<8x128xf32>
    %241 = arith.mulf %225, %233 : vector<8x128xf32>
    %242 = arith.addf %240, %241 : vector<8x128xf32>
    %243 = math.tanh %242 : vector<8x128xf32>
    %244 = arith.mulf %239, %243 : vector<8x128xf32>
    %c0_45 = arith.constant 0 : index
    %c0_46 = arith.constant 0 : index
    %245 = vector.load %arg7[%c0_45, %c0_46] : memref<8x128xf32, #tpu.memory_space<vmem>>, vector<8x128xf32>
    tpu.vector_store %arg7[%c0_45, %c0_46], %244 {strides = array<i32>} : memref<8x128xf32, #tpu.memory_space<vmem>>, vector<8x128xf32>,
    %c0_47 = arith.constant 0 : index
    %c0_48 = arith.constant 0 : index
    %246 = vector.load %arg8[%c0_47, %c0_48] : memref<8x128xf32, #tpu.memory_space<vmem>>, vector<8x128xf32>
    tpu.vector_store %arg8[%c0_47, %c0_48], %242 {strides = array<i32>} : memref<8x128xf32, #tpu.memory_space<vmem>>, vector<8x128xf32>,
    %c0_49 = arith.constant 0 : index
    %c0_50 = arith.constant 0 : index
    %247 = vector.load %arg6[%c0_49, %c0_50] : memref<8x128xf32, #tpu.memory_space<vmem>>, vector<8x128xf32>
    tpu.vector_store %arg6[%c0_49, %c0_50], %244 {strides = array<i32>} : memref<8x128xf32, #tpu.memory_space<vmem>>, vector<8x128xf32>,
    return
  }
  func.func @transform_0(%arg0: i32, %arg1: i32) -> (i32, i32, i32) {
    %c0_i32 = arith.constant 0 : i32
    %c0_i32_0 = arith.constant 0 : i32
    return %arg1, %arg0, %c0_i32 : i32, i32, i32
  }
  func.func @transform_1(%arg0: i32, %arg1: i32) -> (i32, i32) {
    %c0_i32 = arith.constant 0 : i32
    %c0_i32_0 = arith.constant 0 : i32
    %c0_i32_1 = arith.constant 0 : i32
    return %c0_i32, %c0_i32_0 : i32, i32
  }
  func.func @transform_2(%arg0: i32, %arg1: i32) -> (i32, i32) {
    %c0_i32 = arith.constant 0 : i32
    %c0_i32_0 = arith.constant 0 : i32
    %c0_i32_1 = arith.constant 0 : i32
    return %c0_i32, %c0_i32_0 : i32, i32
  }
  func.func @transform_3(%arg0: i32, %arg1: i32) -> (i32, i32) {
    %c0_i32 = arith.constant 0 : i32
    %c0_i32_0 = arith.constant 0 : i32
    %c0_i32_1 = arith.constant 0 : i32
    return %c0_i32, %c0_i32_0 : i32, i32
  }
  func.func @transform_4(%arg0: i32, %arg1: i32) -> (i32, i32) {
    %c0_i32 = arith.constant 0 : i32
    %c0_i32_0 = arith.constant 0 : i32
    return %arg0, %c0_i32 : i32, i32
  }
}

</mosaic_0001>

<llo_original>
// kernel: tpu_custom_call.1
$region0: #{tpu_custom_call.1}
  #allocation0 [shape = 'u32[]', space=smem, size = 0x4, offset = 0x4, fixed_abs, tag = 'smem constant byte address 0x4 - core index']
  #allocation1 [shape = 'u32[144,128]{1,0:T(1,128)}', space=vmem, size = 0x12000, scoped, tag = 'internal scratch']
  #allocation2 [shape = 'f32[8,128]{1,0:T(8,128)}', space=vmem, size = 0x1000, scoped, tag = 'scratch operand']
  #allocation3 [shape = 'f32[8,128]{1,0:T(8,128)}', space=vmem, size = 0x1000, scoped, tag = 'scratch operand']
  %s0 = inlined_call_operand.hbm [shape: bf16[8,8,32], index: 0, kind: input, shape index: {}]
  %s1 = inlined_call_operand.hbm [shape: bf16[32,512], index: 1, kind: input, shape index: {}]
  %s2 = inlined_call_operand.hbm [shape: bf16[128,512], index: 2, kind: input, shape index: {}]
  %s3 = inlined_call_operand.vmem [shape: f32[1,512], index: 3, kind: input, shape index: {}]
  %s4 = inlined_call_operand.hbm [shape: f32[8,128], index: 4, kind: output, shape index: {}]
  %s5 = sld [smem:[#allocation0]]
  $region42: #{tpu_custom_call.1} parent=0
    _
  %s7 = ssub.s32 1, %s5
  %s8 = scalar_select 0, %s7, %s5
  $region1: #{tpu_custom_call.1} parent=0
    #allocation4 [shape = 'u8[16384]{0}', space=vmem, size = 0x4000, scoped, tag = 'input window, operand 0, single buffered']
    #allocation5 [shape = 's32[1]{0}', space=sflag, size = 0x4, scoped, tag = 'scoped memory for tpu_custom_call.1']
    #allocation6 [shape = 's32[1]{0}', space=sflag, size = 0x4, scoped, tag = 'scoped memory for tpu_custom_call.1']
    #allocation7 [shape = 'u8[32768]{0}', space=vmem, size = 0x8000, scoped, tag = 'input window, operand 1, single buffered']
    #allocation8 [shape = 's32[1]{0}', space=sflag, size = 0x4, scoped, tag = 'scoped memory for tpu_custom_call.1']
    #allocation9 [shape = 'u8[131072]{0}', space=vmem, size = 0x20000, scoped, tag = 'input window, operand 2, single buffered']
    #allocation10 [shape = 'u8[4096]{0}', space=vmem, size = 0x1000, scoped, tag = 'output window, operand 0, single buffered']
    %9 = vsyncpa [#allocation5], 0
    %10 = vsyncpa [#allocation8], 0
    %11 = vsyncpa [#allocation6], 0
    // Predicated region
    $region2: #{tpu_custom_call.1} parent=1 // pred_check
      _
    $region3: #{tpu_custom_call.1} parent=1 // pred_check_branch
      %13 = sbr.rel (0) target = $region5
    $region4: #{tpu_custom_call.1} parent=1 // pred_region
      %s15 = ssub.s32 512, 512
      %16 = vsyncadd [#allocation5], %s15
      %s17 = sshll.u32 [#allocation4], 4
      %s18 = int_to_ptr.vmem [resolvable:$true] %s17
      %23 = dma.hbm_to_vmem [thread:$0]  %s0, 512, %s18, [#allocation5], 64, 64, 4
    $region5: #{tpu_custom_call.1} parent=1 // pred_fallthru
      _
    // Predicated region
    $region6: #{tpu_custom_call.1} parent=1 // pred_check
      _
    $region7: #{tpu_custom_call.1} parent=1 // pred_check_branch
      %25 = sbr.rel (0) target = $region9
    $region8: #{tpu_custom_call.1} parent=1 // pred_region
      %s27 = ssub.s32 1024, 1024
      %28 = vsyncadd [#allocation8], %s27
      %s29 = sshll.u32 [#allocation7], 4
      %s30 = int_to_ptr.vmem [resolvable:$true] %s29
      %35 = dma.hbm_to_vmem [thread:$0]  %s1, 1024, %s30, [#allocation8], 256, 256, 16
    $region9: #{tpu_custom_call.1} parent=1 // pred_fallthru
      _
    // Predicated region
    $region10: #{tpu_custom_call.1} parent=1 // pred_check
      _
    $region11: #{tpu_custom_call.1} parent=1 // pred_check_branch
      %37 = sbr.rel (0) target = $region13
    $region12: #{tpu_custom_call.1} parent=1 // pred_region
      %s39 = ssub.s32 4096, 4096
      %40 = vsyncadd [#allocation8], %s39
      %s41 = sshll.u32 [#allocation9], 4
      %s42 = int_to_ptr.vmem [resolvable:$true] %s41
      %47 = dma.hbm_to_vmem [thread:$0]  %s2, 4096, %s42, [#allocation8], 256, 256, 16
    $region13: #{tpu_custom_call.1} parent=1 // pred_fallthru
      _
    // Predicated region
    $region14: #{tpu_custom_call.1} parent=1 // pred_check
      _
    $region15: #{tpu_custom_call.1} parent=1 // pred_check_branch
      %49 = sbr.rel (0) target = $region17
    $region16: #{tpu_custom_call.1} parent=1 // pred_region
      _
    $region17: #{tpu_custom_call.1} parent=1 // pred_fallthru
      _
    // Predicated region
    $region18: #{tpu_custom_call.1} parent=1 // pred_check
      _
    $region19: #{tpu_custom_call.1} parent=1 // pred_check_branch
      %51 = sbr.rel (0) target = $region21
    $region20: #{tpu_custom_call.1} parent=1 // pred_region
      %52 = dma.done [#allocation5], 512
    $region21: #{tpu_custom_call.1} parent=1 // pred_fallthru
      _
    // Predicated region
    $region22: #{tpu_custom_call.1} parent=1 // pred_check
      _
    $region23: #{tpu_custom_call.1} parent=1 // pred_check_branch
      %54 = sbr.rel (0) target = $region25
    $region24: #{tpu_custom_call.1} parent=1 // pred_region
      %55 = dma.done [#allocation8], 1024
    $region25: #{tpu_custom_call.1} parent=1 // pred_fallthru
      _
    // Predicated region
    $region26: #{tpu_custom_call.1} parent=1 // pred_check
      _
    $region27: #{tpu_custom_call.1} parent=1 // pred_check_branch
      %57 = sbr.rel (0) target = $region29
    $region28: #{tpu_custom_call.1} parent=1 // pred_region
      %58 = dma.done [#allocation8], 4096
    $region29: #{tpu_custom_call.1} parent=1 // pred_fallthru
      _
    %p60 = scmp.eq.s32.totalorder 0, 0
    // Predicated region
    $region30: #{tpu_custom_call.1} parent=1 // pred_check
      %p61 = pneg %p60
    $region31: #{tpu_custom_call.1} parent=1 // pred_check_branch
      %63 = sbr.rel (%p61) target = $region33
    $region32: #{tpu_custom_call.1} parent=1 // pred_region
      %64 = vst [vmem:[#allocation2] sm:$0xff] 0.0
      %65 = vst [vmem:[#allocation3] sm:$0xff] 0.0
    $region33: #{tpu_custom_call.1} parent=1 // pred_fallthru
      _
    %v66 = vld [vmem:[#allocation7] sm:$0xff]
    %v67 = vld [vmem:[#allocation7 + $0x8] sm:$0xff]
    %v68 = vld [vmem:[#allocation7 + $0x10] sm:$0xff]
    %v69 = vld [vmem:[#allocation7 + $0x18] sm:$0xff]
    %v70 = vld [vmem:[#allocation7 + $0x20] sm:$0xff]
    %v71 = vld [vmem:[#allocation7 + $0x28] sm:$0xff]
    %v72 = vld [vmem:[#allocation7 + $0x30] sm:$0xff]
    %v73 = vld [vmem:[#allocation7 + $0x38] sm:$0xff]
    %v74 = vld [vmem:[#allocation9] sm:$0xff]
    %v75 = vld [vmem:[#allocation9 + $0x8] sm:$0xff]
    %v76 = vld [vmem:[#allocation9 + $0x10] sm:$0xff]
    %v77 = vld [vmem:[#allocation9 + $0x18] sm:$0xff]
    %v78 = vld [vmem:[#allocation9 + $0x20] sm:$0xff]
    %v79 = vld [vmem:[#allocation9 + $0x28] sm:$0xff]
    %v80 = vld [vmem:[#allocation9 + $0x30] sm:$0xff]
    %v81 = vld [vmem:[#allocation9 + $0x38] sm:$0xff]
    %v82 = vld [vmem:[#allocation9 + $0x40] sm:$0xff]
    %v83 = vld [vmem:[#allocation9 + $0x48] sm:$0xff]
    %v84 = vld [vmem:[#allocation9 + $0x50] sm:$0xff]
    %v85 = vld [vmem:[#allocation9 + $0x58] sm:$0xff]
    %v86 = vld [vmem:[#allocation9 + $0x60] sm:$0xff]
    %v87 = vld [vmem:[#allocation9 + $0x68] sm:$0xff]
    %v88 = vld [vmem:[#allocation9 + $0x70] sm:$0xff]
    %v89 = vld [vmem:[#allocation9 + $0x78] sm:$0xff]
    %v90 = vld [vmem:[#allocation9 + $0x80] sm:$0xff]
    %v91 = vld [vmem:[#allocation9 + $0x88] sm:$0xff]
    %v92 = vld [vmem:[#allocation9 + $0x90] sm:$0xff]
    %v93 = vld [vmem:[#allocation9 + $0x98] sm:$0xff]
    %v94 = vld [vmem:[#allocation9 + $0xa0] sm:$0xff]
    %v95 = vld [vmem:[#allocation9 + $0xa8] sm:$0xff]
    %v96 = vld [vmem:[#allocation9 + $0xb0] sm:$0xff]
    %v97 = vld [vmem:[#allocation9 + $0xb8] sm:$0xff]
    %v98 = vld [vmem:[#allocation9 + $0xc0] sm:$0xff]
    %v99 = vld [vmem:[#allocation9 + $0xc8] sm:$0xff]
    %v100 = vld [vmem:[#allocation9 + $0xd0] sm:$0xff]
    %v101 = vld [vmem:[#allocation9 + $0xd8] sm:$0xff]
    %v102 = vld [vmem:[#allocation9 + $0xe0] sm:$0xff]
    %v103 = vld [vmem:[#allocation9 + $0xe8] sm:$0xff]
    %v104 = vld [vmem:[#allocation9 + $0xf0] sm:$0xff]
    %v105 = vld [vmem:[#allocation9 + $0xf8] sm:$0xff]
    %v106 = vld [vmem:[%s3] sm:$0xf]
    %v107 = vld [vmem:[#allocation4] sm:$0xf]
    %v108 = vld [vmem:[#allocation4 + $0x4] sm:$0xf]
    %v109 = vld [vmem:[#allocation4 + $0x8] sm:$0xf]
    %v110 = vld [vmem:[#allocation4 + $0xc] sm:$0xf]
    %v111 = vld [vmem:[#allocation4 + $0x10] sm:$0xf]
    %v112 = vld [vmem:[#allocation4 + $0x14] sm:$0xf]
    %v113 = vld [vmem:[#allocation4 + $0x18] sm:$0xf]
    %v114 = vld [vmem:[#allocation4 + $0x1c] sm:$0xf]
    %v116 = vlaneseq
    %v117 = vshrl.u32 %v116, 7
    %v118 = vsub.s32 0, %v117
    %v119 = vrot.slane %v106, %v118
    %v120 = vlaneseq
    %v121 = vshrl.u32 %v120, 7
    %v122 = vsub.s32 1, %v121
    %v123 = vrot.slane %v106, %v122
    %v124 = vlaneseq
    %v125 = vshrl.u32 %v124, 7
    %v126 = vsub.s32 2, %v125
    %v127 = vrot.slane %v106, %v126
    %v128 = vlaneseq
    %v129 = vshrl.u32 %v128, 7
    %v130 = vsub.s32 3, %v129
    %v131 = vrot.slane %v106, %v130
    %v144 = vunpack.c.l.b16 %v107
    %v145 = vunpack.c.l.b16 %v108
    %v146 = vunpack.c.l.b16 %v109
    %v147 = vunpack.c.l.b16 %v110
    %v148 = vunpack.c.l.b16 %v111
    %v149 = vunpack.c.l.b16 %v112
    %v150 = vunpack.c.l.b16 %v113
    %v151 = vunpack.c.l.b16 %v114
    %v152 = vpack.c.b16 %v145, %v144
    %v153 = vpack.c.b16 %v147, %v146
    %v154 = vpack.c.b16 %v149, %v148
    %v155 = vpack.c.b16 %v151, %v150
    %v164 = vunpack.c.l.b16 %v66
    %v165 = vunpack.c.h.b16 %v66
    %v166 = vunpack.c.l.b16 %v67
    %v167 = vunpack.c.h.b16 %v67
    %v168 = vunpack.c.l.b16 %v68
    %v169 = vunpack.c.h.b16 %v68
    %v170 = vunpack.c.l.b16 %v69
    %v171 = vunpack.c.h.b16 %v69
    %v172 = vunpack.c.l.b16 %v70
    %v173 = vunpack.c.h.b16 %v70
    %v174 = vunpack.c.l.b16 %v71
    %v175 = vunpack.c.h.b16 %v71
    %v176 = vunpack.c.l.b16 %v72
    %v177 = vunpack.c.h.b16 %v72
    %v178 = vunpack.c.l.b16 %v73
    %v179 = vunpack.c.h.b16 %v73
    %v180 = vpack.c.b16 %v168, %v164
    %v181 = vpack.c.b16 %v169, %v165
    %v182 = vpack.c.b16 %v170, %v166
    %v183 = vpack.c.b16 %v171, %v167
    %v184 = vpack.c.b16 %v176, %v172
    %v185 = vpack.c.b16 %v177, %v173
    %v186 = vpack.c.b16 %v178, %v174
    %v187 = vpack.c.b16 %v179, %v175
    %vm196 = vcmask 261120
    %v198 = vsel %vm196, %v152, 0
    %v201 = vsel %vm196, %v153, 0
    %v204 = vsel %vm196, %v154, 0
    %v207 = vsel %vm196, %v155, 0
    %209 = vmatprep.subr.bf16.mxu0 0
    %210 = vmatpush1.bf16.msra.mxu0 0
    %211 = vmatprep.subr.bf16.mxu0 0
    %212 = vmatpush1.bf16.msra.mxu0 0
    %213 = vmatprep.subr.bf16.mxu0 0
    %214 = vmatpush1.bf16.msra.mxu0 0
    %215 = vmatprep.subr.bf16.mxu0 0
    %216 = vmatpush1.bf16.msra.mxu0 0
    %217 = vmatprep.subr.bf16.mxu0 0
    %218 = vmatpush1.bf16.msra.mxu0 0
    %219 = vmatprep.subr.bf16.mxu0 0
    %220 = vmatpush1.bf16.msra.mxu0 0
    %221 = vmatprep.subr.bf16.mxu0 %v185
    %222 = vmatpush1.bf16.msra.mxu0 %v184
    %223 = vmatprep.subr.bf16.mxu0 %v181
    %224 = vmatpush1.bf16.msra.mxu0 %v180
    %225 = vmatprep.subr.bf16.mxu0 0
    %226 = vmatpush2.bf16.msra.mxu0 0
    %227 = vmatprep.subr.bf16.mxu0 0
    %228 = vmatpush2.bf16.msra.mxu0 0
    %229 = vmatprep.subr.bf16.mxu0 0
    %230 = vmatpush2.bf16.msra.mxu0 0
    %231 = vmatprep.subr.bf16.mxu0 0
    %232 = vmatpush2.bf16.msra.mxu0 0
    %233 = vmatprep.subr.bf16.mxu0 0
    %234 = vmatpush2.bf16.msra.mxu0 0
    %235 = vmatprep.subr.bf16.mxu0 0
    %236 = vmatpush2.bf16.msra.mxu0 0
    %237 = vmatprep.subr.bf16.mxu0 0
    %238 = vmatpush2.bf16.msra.mxu0 0
    %239 = vmatprep.subr.bf16.mxu0 0
    %240 = vmatpush2.bf16.msra.mxu0 0
    %241 = vmatprep.mubr.bf16.mxu0 0
    %242 = vmatmul.mubr.bf16.gmra.mxu0 %v198
    %v243 = vpop.f32.mrf.mxu0
    %v244 = vadd.f32 %v119, %v243
    %v245 = vpop.f32.mrf.mxu0
    %v246 = vadd.f32 %v123, %v245
    %v247 = vpop.f32.mrf.mxu0
    %v248 = vadd.f32 %v119, %v247
    %v249 = vpop.f32.mrf.mxu0
    %v250 = vadd.f32 %v123, %v249
    %251 = vmatprep.mubr.bf16.mxu0 0
    %252 = vmatmul.mubr.bf16.gmra.mxu0 %v201
    %v253 = vpop.f32.mrf.mxu0
    %v254 = vadd.f32 %v119, %v253
    %v255 = vpop.f32.mrf.mxu0
    %v256 = vadd.f32 %v123, %v255
    %v257 = vpop.f32.mrf.mxu0
    %v258 = vadd.f32 %v119, %v257
    %v259 = vpop.f32.mrf.mxu0
    %v260 = vadd.f32 %v123, %v259
    %261 = vmatprep.mubr.bf16.mxu0 0
    %262 = vmatmul.mubr.bf16.gmra.mxu0 %v204
    %v263 = vpop.f32.mrf.mxu0
    %v264 = vadd.f32 %v119, %v263
    %v265 = vpop.f32.mrf.mxu0
    %v266 = vadd.f32 %v123, %v265
    %v267 = vpop.f32.mrf.mxu0
    %v268 = vadd.f32 %v119, %v267
    %v269 = vpop.f32.mrf.mxu0
    %v270 = vadd.f32 %v123, %v269
    %271 = vmatprep.mubr.bf16.mxu0 0
    %272 = vmatmul.mubr.bf16.gmra.mxu0 %v207
    %v273 = vpop.f32.mrf.mxu0
    %v274 = vadd.f32 %v119, %v273
    %v275 = vpop.f32.mrf.mxu0
    %v276 = vadd.f32 %v123, %v275
    %v277 = vpop.f32.mrf.mxu0
    %v278 = vadd.f32 %v119, %v277
    %v279 = vpop.f32.mrf.mxu0
    %v280 = vadd.f32 %v123, %v279
    %281 = vdwg.mxu0
    %282 = vmatprep.subr.bf16.mxu0 0
    %283 = vmatpush1.bf16.msra.mxu0 0
    %284 = vmatprep.subr.bf16.mxu0 0
    %285 = vmatpush1.bf16.msra.mxu0 0
    %286 = vmatprep.subr.bf16.mxu0 0
    %287 = vmatpush1.bf16.msra.mxu0 0
    %288 = vmatprep.subr.bf16.mxu0 0
    %289 = vmatpush1.bf16.msra.mxu0 0
    %290 = vmatprep.subr.bf16.mxu0 0
    %291 = vmatpush1.bf16.msra.mxu0 0
    %292 = vmatprep.subr.bf16.mxu0 0
    %293 = vmatpush1.bf16.msra.mxu0 0
    %294 = vmatprep.subr.bf16.mxu0 %v187
    %295 = vmatpush1.bf16.msra.mxu0 %v186
    %296 = vmatprep.subr.bf16.mxu0 %v183
    %297 = vmatpush1.bf16.msra.mxu0 %v182
    %298 = vmatprep.subr.bf16.mxu0 0
    %299 = vmatpush2.bf16.msra.mxu0 0
    %300 = vmatprep.subr.bf16.mxu0 0
    %301 = vmatpush2.bf16.msra.mxu0 0
    %302 = vmatprep.subr.bf16.mxu0 0
    %303 = vmatpush2.bf16.msra.mxu0 0
    %304 = vmatprep.subr.bf16.mxu0 0
    %305 = vmatpush2.bf16.msra.mxu0 0
    %306 = vmatprep.subr.bf16.mxu0 0
    %307 = vmatpush2.bf16.msra.mxu0 0
    %308 = vmatprep.subr.bf16.mxu0 0
    %309 = vmatpush2.bf16.msra.mxu0 0
    %310 = vmatprep.subr.bf16.mxu0 0
    %311 = vmatpush2.bf16.msra.mxu0 0
    %312 = vmatprep.subr.bf16.mxu0 0
    %313 = vmatpush2.bf16.msra.mxu0 0
    %314 = vmatprep.mubr.bf16.mxu0 0
    %315 = vmatmul.mubr.bf16.gmra.mxu0 %v198
    %v316 = vpop.f32.mrf.mxu0
    %v317 = vadd.f32 %v127, %v316
    %v318 = vpop.f32.mrf.mxu0
    %v319 = vadd.f32 %v131, %v318
    %v320 = vpop.f32.mrf.mxu0
    %v321 = vadd.f32 %v127, %v320
    %v322 = vpop.f32.mrf.mxu0
    %v323 = vadd.f32 %v131, %v322
    %324 = vmatprep.mubr.bf16.mxu0 0
    %325 = vmatmul.mubr.bf16.gmra.mxu0 %v201
    %v326 = vpop.f32.mrf.mxu0
    %v327 = vadd.f32 %v127, %v326
    %v328 = vpop.f32.mrf.mxu0
    %v329 = vadd.f32 %v131, %v328
    %v330 = vpop.f32.mrf.mxu0
    %v331 = vadd.f32 %v127, %v330
    %v332 = vpop.f32.mrf.mxu0
    %v333 = vadd.f32 %v131, %v332
    %334 = vmatprep.mubr.bf16.mxu0 0
    %335 = vmatmul.mubr.bf16.gmra.mxu0 %v204
    %v336 = vpop.f32.mrf.mxu0
    %v337 = vadd.f32 %v127, %v336
    %v338 = vpop.f32.mrf.mxu0
    %v339 = vadd.f32 %v131, %v338
    %v340 = vpop.f32.mrf.mxu0
    %v341 = vadd.f32 %v127, %v340
    %v342 = vpop.f32.mrf.mxu0
    %v343 = vadd.f32 %v131, %v342
    %344 = vmatprep.mubr.bf16.mxu0 0
    %345 = vmatmul.mubr.bf16.gmra.mxu0 %v207
    %v346 = vpop.f32.mrf.mxu0
    %v347 = vadd.f32 %v127, %v346
    %v348 = vpop.f32.mrf.mxu0
    %v349 = vadd.f32 %v131, %v348
    %v350 = vpop.f32.mrf.mxu0
    %v351 = vadd.f32 %v127, %v350
    %v352 = vpop.f32.mrf.mxu0
    %v353 = vadd.f32 %v131, %v352
    %354 = vdwg.mxu0
    %v355 = vld [vmem:[#allocation2] sm:$0xff]
    %v356 = vld [vmem:[#allocation3] sm:$0xff]
    %v357 = vpack.c.bf16 %v355, %v355
    %v390 = vunpack.c.l.b16 %v74
    %v391 = vunpack.c.h.b16 %v74
    %v392 = vunpack.c.l.b16 %v75
    %v393 = vunpack.c.h.b16 %v75
    %v394 = vunpack.c.l.b16 %v76
    %v395 = vunpack.c.h.b16 %v76
    %v396 = vunpack.c.l.b16 %v77
    %v397 = vunpack.c.h.b16 %v77
    %v398 = vunpack.c.l.b16 %v78
    %v399 = vunpack.c.h.b16 %v78
    %v400 = vunpack.c.l.b16 %v79
    %v401 = vunpack.c.h.b16 %v79
    %v402 = vunpack.c.l.b16 %v80
    %v403 = vunpack.c.h.b16 %v80
    %v404 = vunpack.c.l.b16 %v81
    %v405 = vunpack.c.h.b16 %v81
    %v406 = vunpack.c.l.b16 %v82
    %v407 = vunpack.c.h.b16 %v82
    %v408 = vunpack.c.l.b16 %v83
    %v409 = vunpack.c.h.b16 %v83
    %v410 = vunpack.c.l.b16 %v84
    %v411 = vunpack.c.h.b16 %v84
    %v412 = vunpack.c.l.b16 %v85
    %v413 = vunpack.c.h.b16 %v85
    %v414 = vunpack.c.l.b16 %v86
    %v415 = vunpack.c.h.b16 %v86
    %v416 = vunpack.c.l.b16 %v87
    %v417 = vunpack.c.h.b16 %v87
    %v418 = vunpack.c.l.b16 %v88
    %v419 = vunpack.c.h.b16 %v88
    %v420 = vunpack.c.l.b16 %v89
    %v421 = vunpack.c.h.b16 %v89
    %v422 = vunpack.c.l.b16 %v90
    %v423 = vunpack.c.h.b16 %v90
    %v424 = vunpack.c.l.b16 %v91
    %v425 = vunpack.c.h.b16 %v91
    %v426 = vunpack.c.l.b16 %v92
    %v427 = vunpack.c.h.b16 %v92
    %v428 = vunpack.c.l.b16 %v93
    %v429 = vunpack.c.h.b16 %v93
    %v430 = vunpack.c.l.b16 %v94
    %v431 = vunpack.c.h.b16 %v94
    %v432 = vunpack.c.l.b16 %v95
    %v433 = vunpack.c.h.b16 %v95
    %v434 = vunpack.c.l.b16 %v96
    %v435 = vunpack.c.h.b16 %v96
    %v436 = vunpack.c.l.b16 %v97
    %v437 = vunpack.c.h.b16 %v97
    %v438 = vunpack.c.l.b16 %v98
    %v439 = vunpack.c.h.b16 %v98
    %v440 = vunpack.c.l.b16 %v99
    %v441 = vunpack.c.h.b16 %v99
    %v442 = vunpack.c.l.b16 %v100
    %v443 = vunpack.c.h.b16 %v100
    %v444 = vunpack.c.l.b16 %v101
    %v445 = vunpack.c.h.b16 %v101
    %v446 = vunpack.c.l.b16 %v102
    %v447 = vunpack.c.h.b16 %v102
    %v448 = vunpack.c.l.b16 %v103
    %v449 = vunpack.c.h.b16 %v103
    %v450 = vunpack.c.l.b16 %v104
    %v451 = vunpack.c.h.b16 %v104
    %v452 = vunpack.c.l.b16 %v105
    %v453 = vunpack.c.h.b16 %v105
    %v454 = vpack.c.b16 %v394, %v390
    %v455 = vpack.c.b16 %v395, %v391
    %v456 = vpack.c.b16 %v396, %v392
    %v457 = vpack.c.b16 %v397, %v393
    %v458 = vpack.c.b16 %v402, %v398
    %v459 = vpack.c.b16 %v403, %v399
    %v460 = vpack.c.b16 %v404, %v400
    %v461 = vpack.c.b16 %v405, %v401
    %v462 = vpack.c.b16 %v410, %v406
    %v463 = vpack.c.b16 %v411, %v407
    %v464 = vpack.c.b16 %v412, %v408
    %v465 = vpack.c.b16 %v413, %v409
    %v466 = vpack.c.b16 %v418, %v414
    %v467 = vpack.c.b16 %v419, %v415
    %v468 = vpack.c.b16 %v420, %v416
    %v469 = vpack.c.b16 %v421, %v417
    %v470 = vpack.c.b16 %v426, %v422
    %v471 = vpack.c.b16 %v427, %v423
    %v472 = vpack.c.b16 %v428, %v424
    %v473 = vpack.c.b16 %v429, %v425
    %v474 = vpack.c.b16 %v434, %v430
    %v475 = vpack.c.b16 %v435, %v431
    %v476 = vpack.c.b16 %v436, %v432
    %v477 = vpack.c.b16 %v437, %v433
    %v478 = vpack.c.b16 %v442, %v438
    %v479 = vpack.c.b16 %v443, %v439
    %v480 = vpack.c.b16 %v444, %v440
    %v481 = vpack.c.b16 %v445, %v441
    %v482 = vpack.c.b16 %v450, %v446
    %v483 = vpack.c.b16 %v451, %v447
    %v484 = vpack.c.b16 %v452, %v448
    %v485 = vpack.c.b16 %v453, %v449
    %518 = vmatprep.subr.bf16.mxu0 %v483
    %519 = vmatpush1.bf16.msra.mxu0 %v482
    %520 = vmatprep.subr.bf16.mxu0 %v479
    %521 = vmatpush1.bf16.msra.mxu0 %v478
    %522 = vmatprep.subr.bf16.mxu0 %v475
    %523 = vmatpush1.bf16.msra.mxu0 %v474
    %524 = vmatprep.subr.bf16.mxu0 %v471
    %525 = vmatpush1.bf16.msra.mxu0 %v470
    %526 = vmatprep.subr.bf16.mxu0 %v467
    %527 = vmatpush1.bf16.msra.mxu0 %v466
    %528 = vmatprep.subr.bf16.mxu0 %v463
    %529 = vmatpush1.bf16.msra.mxu0 %v462
    %530 = vmatprep.subr.bf16.mxu0 %v459
    %531 = vmatpush1.bf16.msra.mxu0 %v458
    %532 = vmatprep.subr.bf16.mxu0 %v455
    %533 = vmatpush1.bf16.msra.mxu0 %v454
    %534 = vmatprep.subr.bf16.mxu0 0
    %535 = vmatpush2.bf16.msra.mxu0 0
    %536 = vmatprep.subr.bf16.mxu0 0
    %537 = vmatpush2.bf16.msra.mxu0 0
    %538 = vmatprep.subr.bf16.mxu0 0
    %539 = vmatpush2.bf16.msra.mxu0 0
    %540 = vmatprep.subr.bf16.mxu0 0
    %541 = vmatpush2.bf16.msra.mxu0 0
    %542 = vmatprep.subr.bf16.mxu0 0
    %543 = vmatpush2.bf16.msra.mxu0 0
    %544 = vmatprep.subr.bf16.mxu0 0
    %545 = vmatpush2.bf16.msra.mxu0 0
    %546 = vmatprep.subr.bf16.mxu0 0
    %547 = vmatpush2.bf16.msra.mxu0 0
    %548 = vmatprep.subr.bf16.mxu0 0
    %549 = vmatpush2.bf16.msra.mxu0 0
    %550 = vmatprep.mubr.bf16.mxu0 0
    %551 = vmatmul.mubr.bf16.gmra.mxu0 %v357
    %v552 = vpop.f32.mrf.mxu0
    %v553 = vadd.f32 0.0, %v552
    %v554 = vpop.f32.mrf.mxu0
    %v555 = vadd.f32 0.0, %v554
    %v556 = vpop.f32.mrf.mxu0
    %v557 = vpop.f32.mrf.mxu0
    %558 = vdwg.mxu0
    %559 = vmatprep.subr.bf16.mxu0 %v485
    %560 = vmatpush1.bf16.msra.mxu0 %v484
    %561 = vmatprep.subr.bf16.mxu0 %v481
    %562 = vmatpush1.bf16.msra.mxu0 %v480
    %563 = vmatprep.subr.bf16.mxu0 %v477
    %564 = vmatpush1.bf16.msra.mxu0 %v476
    %565 = vmatprep.subr.bf16.mxu0 %v473
    %566 = vmatpush1.bf16.msra.mxu0 %v472
    %567 = vmatprep.subr.bf16.mxu0 %v469
    %568 = vmatpush1.bf16.msra.mxu0 %v468
    %569 = vmatprep.subr.bf16.mxu0 %v465
    %570 = vmatpush1.bf16.msra.mxu0 %v464
    %571 = vmatprep.subr.bf16.mxu0 %v461
    %572 = vmatpush1.bf16.msra.mxu0 %v460
    %573 = vmatprep.subr.bf16.mxu0 %v457
    %574 = vmatpush1.bf16.msra.mxu0 %v456
    %575 = vmatprep.subr.bf16.mxu0 0
    %576 = vmatpush2.bf16.msra.mxu0 0
    %577 = vmatprep.subr.bf16.mxu0 0
    %578 = vmatpush2.bf16.msra.mxu0 0
    %579 = vmatprep.subr.bf16.mxu0 0
    %580 = vmatpush2.bf16.msra.mxu0 0
    %581 = vmatprep.subr.bf16.mxu0 0
    %582 = vmatpush2.bf16.msra.mxu0 0
    %583 = vmatprep.subr.bf16.mxu0 0
    %584 = vmatpush2.bf16.msra.mxu0 0
    %585 = vmatprep.subr.bf16.mxu0 0
    %586 = vmatpush2.bf16.msra.mxu0 0
    %587 = vmatprep.subr.bf16.mxu0 0
    %588 = vmatpush2.bf16.msra.mxu0 0
    %589 = vmatprep.subr.bf16.mxu0 0
    %590 = vmatpush2.bf16.msra.mxu0 0
    %591 = vmatprep.mubr.bf16.mxu0 0
    %592 = vmatmul.mubr.bf16.gmra.mxu0 %v357
    %v593 = vpop.f32.mrf.mxu0
    %v594 = vadd.f32 0.0, %v593
    %v595 = vpop.f32.mrf.mxu0
    %v596 = vadd.f32 0.0, %v595
    %v597 = vpop.f32.mrf.mxu0
    %v598 = vpop.f32.mrf.mxu0
    %599 = vdwg.mxu0
    %v600 = vadd.f32 %v244, %v553
    %v601 = vadd.f32 %v246, %v555
    %v602 = vadd.f32 %v317, %v594
    %v603 = vadd.f32 %v319, %v596
    %v604 = vxor.u32 %v600, 2147483648
    %v605 = vmul.f32 %v604, 1.442695
    %v606 = vpow.pop %v605
    %v607 = vadd.f32 %v606, 1.0
    %v608 = vrcp.pop %v607
    %v609 = vmul.f32 1.0, %v608
    %v610 = vxor.u32 %v601, 2147483648
    %v611 = vmul.f32 %v610, 1.442695
    %v612 = vpow.pop %v611
    %v613 = vadd.f32 %v612, 1.0
    %v614 = vrcp.pop %v613
    %v615 = vmul.f32 1.0, %v614
    %v616 = vtanh.pop %v602
    %v617 = vxor.u32 %v603, 2147483648
    %v618 = vmul.f32 %v617, 1.442695
    %v619 = vpow.pop %v618
    %v620 = vadd.f32 %v619, 1.0
    %v621 = vrcp.pop %v620
    %v622 = vmul.f32 1.0, %v621
    %v623 = vmul.f32 %v615, %v356
    %v624 = vmul.f32 %v609, %v616
    %v625 = vadd.f32 %v623, %v624
    %v626 = vtanh.pop %v625
    %v627 = vmul.f32 %v622, %v626
    %v628 = vpack.c.bf16 %v627, %v627
    %629 = vmatprep.subr.bf16.mxu0 %v483
    %630 = vmatpush1.bf16.msra.mxu0 %v482
    %631 = vmatprep.subr.bf16.mxu0 %v479
    %632 = vmatpush1.bf16.msra.mxu0 %v478
    %633 = vmatprep.subr.bf16.mxu0 %v475
    %634 = vmatpush1.bf16.msra.mxu0 %v474
    %635 = vmatprep.subr.bf16.mxu0 %v471
    %636 = vmatpush1.bf16.msra.mxu0 %v470
    %637 = vmatprep.subr.bf16.mxu0 %v467
    %638 = vmatpush1.bf16.msra.mxu0 %v466
    %639 = vmatprep.subr.bf16.mxu0 %v463
    %640 = vmatpush1.bf16.msra.mxu0 %v462
    %641 = vmatprep.subr.bf16.mxu0 %v459
    %642 = vmatpush1.bf16.msra.mxu0 %v458
    %643 = vmatprep.subr.bf16.mxu0 %v455
    %644 = vmatpush1.bf16.msra.mxu0 %v454
    %645 = vmatprep.subr.bf16.mxu0 0
    %646 = vmatpush2.bf16.msra.mxu0 0
    %647 = vmatprep.subr.bf16.mxu0 0
    %648 = vmatpush2.bf16.msra.mxu0 0
    %649 = vmatprep.subr.bf16.mxu0 0
    %650 = vmatpush2.bf16.msra.mxu0 0
    %651 = vmatprep.subr.bf16.mxu0 0
    %652 = vmatpush2.bf16.msra.mxu0 0
    %653 = vmatprep.subr.bf16.mxu0 0
    %654 = vmatpush2.bf16.msra.mxu0 0
    %655 = vmatprep.subr.bf16.mxu0 0
    %656 = vmatpush2.bf16.msra.mxu0 0
    %657 = vmatprep.subr.bf16.mxu0 0
    %658 = vmatpush2.bf16.msra.mxu0 0
    %659 = vmatprep.subr.bf16.mxu0 0
    %660 = vmatpush2.bf16.msra.mxu0 0
    %661 = vmatprep.mubr.bf16.mxu0 0
    %662 = vmatmul.mubr.bf16.gmra.mxu0 %v628
    %v663 = vpop.f32.mrf.mxu0
    %v664 = vadd.f32 0.0, %v663
    %v665 = vpop.f32.mrf.mxu0
    %v666 = vadd.f32 0.0, %v665
    %v667 = vpop.f32.mrf.mxu0
    %v668 = vpop.f32.mrf.mxu0
    %669 = vdwg.mxu0
    %670 = vmatprep.subr.bf16.mxu0 %v485
    %671 = vmatpush1.bf16.msra.mxu0 %v484
    %672 = vmatprep.subr.bf16.mxu0 %v481
    %673 = vmatpush1.bf16.msra.mxu0 %v480
    %674 = vmatprep.subr.bf16.mxu0 %v477
    %675 = vmatpush1.bf16.msra.mxu0 %v476
    %676 = vmatprep.subr.bf16.mxu0 %v473
    %677 = vmatpush1.bf16.msra.mxu0 %v472
    %678 = vmatprep.subr.bf16.mxu0 %v469
    %679 = vmatpush1.bf16.msra.mxu0 %v468
    %680 = vmatprep.subr.bf16.mxu0 %v465
    %681 = vmatpush1.bf16.msra.mxu0 %v464
    %682 = vmatprep.subr.bf16.mxu0 %v461
    %683 = vmatpush1.bf16.msra.mxu0 %v460
    %684 = vmatprep.subr.bf16.mxu0 %v457
    %685 = vmatpush1.bf16.msra.mxu0 %v456
    %686 = vmatprep.subr.bf16.mxu0 0
    %687 = vmatpush2.bf16.msra.mxu0 0
    %688 = vmatprep.subr.bf16.mxu0 0
    %689 = vmatpush2.bf16.msra.mxu0 0
    %690 = vmatprep.subr.bf16.mxu0 0
    %691 = vmatpush2.bf16.msra.mxu0 0
    %692 = vmatprep.subr.bf16.mxu0 0
    %693 = vmatpush2.bf16.msra.mxu0 0
    %694 = vmatprep.subr.bf16.mxu0 0
    %695 = vmatpush2.bf16.msra.mxu0 0
    %696 = vmatprep.subr.bf16.mxu0 0
    %697 = vmatpush2.bf16.msra.mxu0 0
    %698 = vmatprep.subr.bf16.mxu0 0
    %699 = vmatpush2.bf16.msra.mxu0 0
    %700 = vmatprep.subr.bf16.mxu0 0
    %701 = vmatpush2.bf16.msra.mxu0 0
    %702 = vmatprep.mubr.bf16.mxu0 0
    %703 = vmatmul.mubr.bf16.gmra.mxu0 %v628
    %v704 = vpop.f32.mrf.mxu0
    %v705 = vadd.f32 0.0, %v704
    %v706 = vpop.f32.mrf.mxu0
    %v707 = vadd.f32 0.0, %v706
    %v708 = vpop.f32.mrf.mxu0
    %v709 = vpop.f32.mrf.mxu0
    %710 = vdwg.mxu0
    %v711 = vadd.f32 %v248, %v664
    %v712 = vadd.f32 %v250, %v666
    %v713 = vadd.f32 %v321, %v705
    %v714 = vadd.f32 %v323, %v707
    %v715 = vxor.u32 %v711, 2147483648
    %v716 = vmul.f32 %v715, 1.442695
    %v717 = vpow.pop %v716
    %v718 = vadd.f32 %v717, 1.0
    %v719 = vrcp.pop %v718
    %v720 = vmul.f32 1.0, %v719
    %v721 = vxor.u32 %v712, 2147483648
    %v722 = vmul.f32 %v721, 1.442695
    %v723 = vpow.pop %v722
    %v724 = vadd.f32 %v723, 1.0
    %v725 = vrcp.pop %v724
    %v726 = vmul.f32 1.0, %v725
    %v727 = vtanh.pop %v713
    %v728 = vxor.u32 %v714, 2147483648
    %v729 = vmul.f32 %v728, 1.442695
    %v730 = vpow.pop %v729
    %v731 = vadd.f32 %v730, 1.0
    %v732 = vrcp.pop %v731
    %v733 = vmul.f32 1.0, %v732
    %v734 = vmul.f32 %v726, %v625
    %v735 = vmul.f32 %v720, %v727
    %v736 = vadd.f32 %v734, %v735
    %v737 = vtanh.pop %v736
    %v738 = vmul.f32 %v733, %v737
    %v739 = vpack.c.bf16 %v738, %v738
    %740 = vmatprep.subr.bf16.mxu0 %v483
    %741 = vmatpush1.bf16.msra.mxu0 %v482
    %742 = vmatprep.subr.bf16.mxu0 %v479
    %743 = vmatpush1.bf16.msra.mxu0 %v478
    %744 = vmatprep.subr.bf16.mxu0 %v475
    %745 = vmatpush1.bf16.msra.mxu0 %v474
    %746 = vmatprep.subr.bf16.mxu0 %v471
    %747 = vmatpush1.bf16.msra.mxu0 %v470
    %748 = vmatprep.subr.bf16.mxu0 %v467
    %749 = vmatpush1.bf16.msra.mxu0 %v466
    %750 = vmatprep.subr.bf16.mxu0 %v463
    %751 = vmatpush1.bf16.msra.mxu0 %v462
    %752 = vmatprep.subr.bf16.mxu0 %v459
    %753 = vmatpush1.bf16.msra.mxu0 %v458
    %754 = vmatprep.subr.bf16.mxu0 %v455
    %755 = vmatpush1.bf16.msra.mxu0 %v454
    %756 = vmatprep.subr.bf16.mxu0 0
    %757 = vmatpush2.bf16.msra.mxu0 0
    %758 = vmatprep.subr.bf16.mxu0 0
    %759 = vmatpush2.bf16.msra.mxu0 0
    %760 = vmatprep.subr.bf16.mxu0 0
    %761 = vmatpush2.bf16.msra.mxu0 0
    %762 = vmatprep.subr.bf16.mxu0 0
    %763 = vmatpush2.bf16.msra.mxu0 0
    %764 = vmatprep.subr.bf16.mxu0 0
    %765 = vmatpush2.bf16.msra.mxu0 0
    %766 = vmatprep.subr.bf16.mxu0 0
    %767 = vmatpush2.bf16.msra.mxu0 0
    %768 = vmatprep.subr.bf16.mxu0 0
    %769 = vmatpush2.bf16.msra.mxu0 0
    %770 = vmatprep.subr.bf16.mxu0 0
    %771 = vmatpush2.bf16.msra.mxu0 0
    %772 = vmatprep.mubr.bf16.mxu0 0
    %773 = vmatmul.mubr.bf16.gmra.mxu0 %v739
    %v774 = vpop.f32.mrf.mxu0
    %v775 = vadd.f32 0.0, %v774
    %v776 = vpop.f32.mrf.mxu0
    %v777 = vadd.f32 0.0, %v776
    %v778 = vpop.f32.mrf.mxu0
    %v779 = vpop.f32.mrf.mxu0
    %780 = vdwg.mxu0
    %781 = vmatprep.subr.bf16.mxu0 %v485
    %782 = vmatpush1.bf16.msra.mxu0 %v484
    %783 = vmatprep.subr.bf16.mxu0 %v481
    %784 = vmatpush1.bf16.msra.mxu0 %v480
    %785 = vmatprep.subr.bf16.mxu0 %v477
    %786 = vmatpush1.bf16.msra.mxu0 %v476
    %787 = vmatprep.subr.bf16.mxu0 %v473
    %788 = vmatpush1.bf16.msra.mxu0 %v472
    %789 = vmatprep.subr.bf16.mxu0 %v469
    %790 = vmatpush1.bf16.msra.mxu0 %v468
    %791 = vmatprep.subr.bf16.mxu0 %v465
    %792 = vmatpush1.bf16.msra.mxu0 %v464
    %793 = vmatprep.subr.bf16.mxu0 %v461
    %794 = vmatpush1.bf16.msra.mxu0 %v460
    %795 = vmatprep.subr.bf16.mxu0 %v457
    %796 = vmatpush1.bf16.msra.mxu0 %v456
    %797 = vmatprep.subr.bf16.mxu0 0
    %798 = vmatpush2.bf16.msra.mxu0 0
    %799 = vmatprep.subr.bf16.mxu0 0
    %800 = vmatpush2.bf16.msra.mxu0 0
    %801 = vmatprep.subr.bf16.mxu0 0
    %802 = vmatpush2.bf16.msra.mxu0 0
    %803 = vmatprep.subr.bf16.mxu0 0
    %804 = vmatpush2.bf16.msra.mxu0 0
    %805 = vmatprep.subr.bf16.mxu0 0
    %806 = vmatpush2.bf16.msra.mxu0 0
    %807 = vmatprep.subr.bf16.mxu0 0
    %808 = vmatpush2.bf16.msra.mxu0 0
    %809 = vmatprep.subr.bf16.mxu0 0
    %810 = vmatpush2.bf16.msra.mxu0 0
    %811 = vmatprep.subr.bf16.mxu0 0
    %812 = vmatpush2.bf16.msra.mxu0 0
    %813 = vmatprep.mubr.bf16.mxu0 0
    %814 = vmatmul.mubr.bf16.gmra.mxu0 %v739
    %v815 = vpop.f32.mrf.mxu0
    %v816 = vadd.f32 0.0, %v815
    %v817 = vpop.f32.mrf.mxu0
    %v818 = vadd.f32 0.0, %v817
    %v819 = vpop.f32.mrf.mxu0
    %v820 = vpop.f32.mrf.mxu0
    %821 = vdwg.mxu0
    %v822 = vadd.f32 %v254, %v775
    %v823 = vadd.f32 %v256, %v777
    %v824 = vadd.f32 %v327, %v816
    %v825 = vadd.f32 %v329, %v818
    %v826 = vxor.u32 %v822, 2147483648
    %v827 = vmul.f32 %v826, 1.442695
    %v828 = vpow.pop %v827
    %v829 = vadd.f32 %v828, 1.0
    %v830 = vrcp.pop %v829
    %v831 = vmul.f32 1.0, %v830
    %v832 = vxor.u32 %v823, 2147483648
    %v833 = vmul.f32 %v832, 1.442695
    %v834 = vpow.pop %v833
    %v835 = vadd.f32 %v834, 1.0
    %v836 = vrcp.pop %v835
    %v837 = vmul.f32 1.0, %v836
    %v838 = vtanh.pop %v824
    %v839 = vxor.u32 %v825, 2147483648
    %v840 = vmul.f32 %v839, 1.442695
    %v841 = vpow.pop %v840
    %v842 = vadd.f32 %v841, 1.0
    %v843 = vrcp.pop %v842
    %v844 = vmul.f32 1.0, %v843
    %v845 = vmul.f32 %v837, %v736
    %v846 = vmul.f32 %v831, %v838
    %v847 = vadd.f32 %v845, %v846
    %v848 = vtanh.pop %v847
    %v849 = vmul.f32 %v844, %v848
    %v850 = vpack.c.bf16 %v849, %v849
    %851 = vmatprep.subr.bf16.mxu0 %v483
    %852 = vmatpush1.bf16.msra.mxu0 %v482
    %853 = vmatprep.subr.bf16.mxu0 %v479
    %854 = vmatpush1.bf16.msra.mxu0 %v478
    %855 = vmatprep.subr.bf16.mxu0 %v475
    %856 = vmatpush1.bf16.msra.mxu0 %v474
    %857 = vmatprep.subr.bf16.mxu0 %v471
    %858 = vmatpush1.bf16.msra.mxu0 %v470
    %859 = vmatprep.subr.bf16.mxu0 %v467
    %860 = vmatpush1.bf16.msra.mxu0 %v466
    %861 = vmatprep.subr.bf16.mxu0 %v463
    %862 = vmatpush1.bf16.msra.mxu0 %v462
    %863 = vmatprep.subr.bf16.mxu0 %v459
    %864 = vmatpush1.bf16.msra.mxu0 %v458
    %865 = vmatprep.subr.bf16.mxu0 %v455
    %866 = vmatpush1.bf16.msra.mxu0 %v454
    %867 = vmatprep.subr.bf16.mxu0 0
    %868 = vmatpush2.bf16.msra.mxu0 0
    %869 = vmatprep.subr.bf16.mxu0 0
    %870 = vmatpush2.bf16.msra.mxu0 0
    %871 = vmatprep.subr.bf16.mxu0 0
    %872 = vmatpush2.bf16.msra.mxu0 0
    %873 = vmatprep.subr.bf16.mxu0 0
    %874 = vmatpush2.bf16.msra.mxu0 0
    %875 = vmatprep.subr.bf16.mxu0 0
    %876 = vmatpush2.bf16.msra.mxu0 0
    %877 = vmatprep.subr.bf16.mxu0 0
    %878 = vmatpush2.bf16.msra.mxu0 0
    %879 = vmatprep.subr.bf16.mxu0 0
    %880 = vmatpush2.bf16.msra.mxu0 0
    %881 = vmatprep.subr.bf16.mxu0 0
    %882 = vmatpush2.bf16.msra.mxu0 0
    %883 = vmatprep.mubr.bf16.mxu0 0
    %884 = vmatmul.mubr.bf16.gmra.mxu0 %v850
    %v885 = vpop.f32.mrf.mxu0
    %v886 = vadd.f32 0.0, %v885
    %v887 = vpop.f32.mrf.mxu0
    %v888 = vadd.f32 0.0, %v887
    %v889 = vpop.f32.mrf.mxu0
    %v890 = vpop.f32.mrf.mxu0
    %891 = vdwg.mxu0
    %892 = vmatprep.subr.bf16.mxu0 %v485
    %893 = vmatpush1.bf16.msra.mxu0 %v484
    %894 = vmatprep.subr.bf16.mxu0 %v481
    %895 = vmatpush1.bf16.msra.mxu0 %v480
    %896 = vmatprep.subr.bf16.mxu0 %v477
    %897 = vmatpush1.bf16.msra.mxu0 %v476
    %898 = vmatprep.subr.bf16.mxu0 %v473
    %899 = vmatpush1.bf16.msra.mxu0 %v472
    %900 = vmatprep.subr.bf16.mxu0 %v469
    %901 = vmatpush1.bf16.msra.mxu0 %v468
    %902 = vmatprep.subr.bf16.mxu0 %v465
    %903 = vmatpush1.bf16.msra.mxu0 %v464
    %904 = vmatprep.subr.bf16.mxu0 %v461
    %905 = vmatpush1.bf16.msra.mxu0 %v460
    %906 = vmatprep.subr.bf16.mxu0 %v457
    %907 = vmatpush1.bf16.msra.mxu0 %v456
    %908 = vmatprep.subr.bf16.mxu0 0
    %909 = vmatpush2.bf16.msra.mxu0 0
    %910 = vmatprep.subr.bf16.mxu0 0
    %911 = vmatpush2.bf16.msra.mxu0 0
    %912 = vmatprep.subr.bf16.mxu0 0
    %913 = vmatpush2.bf16.msra.mxu0 0
    %914 = vmatprep.subr.bf16.mxu0 0
    %915 = vmatpush2.bf16.msra.mxu0 0
    %916 = vmatprep.subr.bf16.mxu0 0
    %917 = vmatpush2.bf16.msra.mxu0 0
    %918 = vmatprep.subr.bf16.mxu0 0
    %919 = vmatpush2.bf16.msra.mxu0 0
    %920 = vmatprep.subr.bf16.mxu0 0
    %921 = vmatpush2.bf16.msra.mxu0 0
    %922 = vmatprep.subr.bf16.mxu0 0
    %923 = vmatpush2.bf16.msra.mxu0 0
    %924 = vmatprep.mubr.bf16.mxu0 0
    %925 = vmatmul.mubr.bf16.gmra.mxu0 %v850
    %v926 = vpop.f32.mrf.mxu0
    %v927 = vadd.f32 0.0, %v926
    %v928 = vpop.f32.mrf.mxu0
    %v929 = vadd.f32 0.0, %v928
    %v930 = vpop.f32.mrf.mxu0
    %v931 = vpop.f32.mrf.mxu0
    %932 = vdwg.mxu0
    %v933 = vadd.f32 %v258, %v886
    %v934 = vadd.f32 %v260, %v888
    %v935 = vadd.f32 %v331, %v927
    %v936 = vadd.f32 %v333, %v929
    %v937 = vxor.u32 %v933, 2147483648
    %v938 = vmul.f32 %v937, 1.442695
    %v939 = vpow.pop %v938
    %v940 = vadd.f32 %v939, 1.0
    %v941 = vrcp.pop %v940
    %v942 = vmul.f32 1.0, %v941
    %v943 = vxor.u32 %v934, 2147483648
    %v944 = vmul.f32 %v943, 1.442695
    %v945 = vpow.pop %v944
    %v946 = vadd.f32 %v945, 1.0
    %v947 = vrcp.pop %v946
    %v948 = vmul.f32 1.0, %v947
    %v949 = vtanh.pop %v935
    %v950 = vxor.u32 %v936, 2147483648
    %v951 = vmul.f32 %v950, 1.442695
    %v952 = vpow.pop %v951
    %v953 = vadd.f32 %v952, 1.0
    %v954 = vrcp.pop %v953
    %v955 = vmul.f32 1.0, %v954
    %v956 = vmul.f32 %v948, %v847
    %v957 = vmul.f32 %v942, %v949
    %v958 = vadd.f32 %v956, %v957
    %v959 = vtanh.pop %v958
    %v960 = vmul.f32 %v955, %v959
    %v961 = vpack.c.bf16 %v960, %v960
    %962 = vmatprep.subr.bf16.mxu0 %v483
    %963 = vmatpush1.bf16.msra.mxu0 %v482
    %964 = vmatprep.subr.bf16.mxu0 %v479
    %965 = vmatpush1.bf16.msra.mxu0 %v478
    %966 = vmatprep.subr.bf16.mxu0 %v475
    %967 = vmatpush1.bf16.msra.mxu0 %v474
    %968 = vmatprep.subr.bf16.mxu0 %v471
    %969 = vmatpush1.bf16.msra.mxu0 %v470
    %970 = vmatprep.subr.bf16.mxu0 %v467
    %971 = vmatpush1.bf16.msra.mxu0 %v466
    %972 = vmatprep.subr.bf16.mxu0 %v463
    %973 = vmatpush1.bf16.msra.mxu0 %v462
    %974 = vmatprep.subr.bf16.mxu0 %v459
    %975 = vmatpush1.bf16.msra.mxu0 %v458
    %976 = vmatprep.subr.bf16.mxu0 %v455
    %977 = vmatpush1.bf16.msra.mxu0 %v454
    %978 = vmatprep.subr.bf16.mxu0 0
    %979 = vmatpush2.bf16.msra.mxu0 0
    %980 = vmatprep.subr.bf16.mxu0 0
    %981 = vmatpush2.bf16.msra.mxu0 0
    %982 = vmatprep.subr.bf16.mxu0 0
    %983 = vmatpush2.bf16.msra.mxu0 0
    %984 = vmatprep.subr.bf16.mxu0 0
    %985 = vmatpush2.bf16.msra.mxu0 0
    %986 = vmatprep.subr.bf16.mxu0 0
    %987 = vmatpush2.bf16.msra.mxu0 0
    %988 = vmatprep.subr.bf16.mxu0 0
    %989 = vmatpush2.bf16.msra.mxu0 0
    %990 = vmatprep.subr.bf16.mxu0 0
    %991 = vmatpush2.bf16.msra.mxu0 0
    %992 = vmatprep.subr.bf16.mxu0 0
    %993 = vmatpush2.bf16.msra.mxu0 0
    %994 = vmatprep.mubr.bf16.mxu0 0
    %995 = vmatmul.mubr.bf16.gmra.mxu0 %v961
    %v996 = vpop.f32.mrf.mxu0
    %v997 = vadd.f32 0.0, %v996
    %v998 = vpop.f32.mrf.mxu0
    %v999 = vadd.f32 0.0, %v998
    %v1000 = vpop.f32.mrf.mxu0
    %v1001 = vpop.f32.mrf.mxu0
    %1002 = vdwg.mxu0
    %1003 = vmatprep.subr.bf16.mxu0 %v485
    %1004 = vmatpush1.bf16.msra.mxu0 %v484
    %1005 = vmatprep.subr.bf16.mxu0 %v481
    %1006 = vmatpush1.bf16.msra.mxu0 %v480
    %1007 = vmatprep.subr.bf16.mxu0 %v477
    %1008 = vmatpush1.bf16.msra.mxu0 %v476
    %1009 = vmatprep.subr.bf16.mxu0 %v473
    %1010 = vmatpush1.bf16.msra.mxu0 %v472
    %1011 = vmatprep.subr.bf16.mxu0 %v469
    %1012 = vmatpush1.bf16.msra.mxu0 %v468
    %1013 = vmatprep.subr.bf16.mxu0 %v465
    %1014 = vmatpush1.bf16.msra.mxu0 %v464
    %1015 = vmatprep.subr.bf16.mxu0 %v461
    %1016 = vmatpush1.bf16.msra.mxu0 %v460
    %1017 = vmatprep.subr.bf16.mxu0 %v457
    %1018 = vmatpush1.bf16.msra.mxu0 %v456
    %1019 = vmatprep.subr.bf16.mxu0 0
    %1020 = vmatpush2.bf16.msra.mxu0 0
    %1021 = vmatprep.subr.bf16.mxu0 0
    %1022 = vmatpush2.bf16.msra.mxu0 0
    %1023 = vmatprep.subr.bf16.mxu0 0
    %1024 = vmatpush2.bf16.msra.mxu0 0
    %1025 = vmatprep.subr.bf16.mxu0 0
    %1026 = vmatpush2.bf16.msra.mxu0 0
    %1027 = vmatprep.subr.bf16.mxu0 0
    %1028 = vmatpush2.bf16.msra.mxu0 0
    %1029 = vmatprep.subr.bf16.mxu0 0
    %1030 = vmatpush2.bf16.msra.mxu0 0
    %1031 = vmatprep.subr.bf16.mxu0 0
    %1032 = vmatpush2.bf16.msra.mxu0 0
    %1033 = vmatprep.subr.bf16.mxu0 0
    %1034 = vmatpush2.bf16.msra.mxu0 0
    %1035 = vmatprep.mubr.bf16.mxu0 0
    %1036 = vmatmul.mubr.bf16.gmra.mxu0 %v961
    %v1037 = vpop.f32.mrf.mxu0
    %v1038 = vadd.f32 0.0, %v1037
    %v1039 = vpop.f32.mrf.mxu0
    %v1040 = vadd.f32 0.0, %v1039
    %v1041 = vpop.f32.mrf.mxu0
    %v1042 = vpop.f32.mrf.mxu0
    %1043 = vdwg.mxu0
    %v1044 = vadd.f32 %v264, %v997
    %v1045 = vadd.f32 %v266, %v999
    %v1046 = vadd.f32 %v337, %v1038
    %v1047 = vadd.f32 %v339, %v1040
    %v1048 = vxor.u32 %v1044, 2147483648
    %v1049 = vmul.f32 %v1048, 1.442695
    %v1050 = vpow.pop %v1049
    %v1051 = vadd.f32 %v1050, 1.0
    %v1052 = vrcp.pop %v1051
    %v1053 = vmul.f32 1.0, %v1052
    %v1054 = vxor.u32 %v1045, 2147483648
    %v1055 = vmul.f32 %v1054, 1.442695
    %v1056 = vpow.pop %v1055
    %v1057 = vadd.f32 %v1056, 1.0
    %v1058 = vrcp.pop %v1057
    %v1059 = vmul.f32 1.0, %v1058
    %v1060 = vtanh.pop %v1046
    %v1061 = vxor.u32 %v1047, 2147483648
    %v1062 = vmul.f32 %v1061, 1.442695
    %v1063 = vpow.pop %v1062
    %v1064 = vadd.f32 %v1063, 1.0
    %v1065 = vrcp.pop %v1064
    %v1066 = vmul.f32 1.0, %v1065
    %v1067 = vmul.f32 %v1059, %v958
    %v1068 = vmul.f32 %v1053, %v1060
    %v1069 = vadd.f32 %v1067, %v1068
    %v1070 = vtanh.pop %v1069
    %v1071 = vmul.f32 %v1066, %v1070
    %v1072 = vpack.c.bf16 %v1071, %v1071
    %1073 = vmatprep.subr.bf16.mxu0 %v483
    %1074 = vmatpush1.bf16.msra.mxu0 %v482
    %1075 = vmatprep.subr.bf16.mxu0 %v479
    %1076 = vmatpush1.bf16.msra.mxu0 %v478
    %1077 = vmatprep.subr.bf16.mxu0 %v475
    %1078 = vmatpush1.bf16.msra.mxu0 %v474
    %1079 = vmatprep.subr.bf16.mxu0 %v471
    %1080 = vmatpush1.bf16.msra.mxu0 %v470
    %1081 = vmatprep.subr.bf16.mxu0 %v467
    %1082 = vmatpush1.bf16.msra.mxu0 %v466
    %1083 = vmatprep.subr.bf16.mxu0 %v463
    %1084 = vmatpush1.bf16.msra.mxu0 %v462
    %1085 = vmatprep.subr.bf16.mxu0 %v459
    %1086 = vmatpush1.bf16.msra.mxu0 %v458
    %1087 = vmatprep.subr.bf16.mxu0 %v455
    %1088 = vmatpush1.bf16.msra.mxu0 %v454
    %1089 = vmatprep.subr.bf16.mxu0 0
    %1090 = vmatpush2.bf16.msra.mxu0 0
    %1091 = vmatprep.subr.bf16.mxu0 0
    %1092 = vmatpush2.bf16.msra.mxu0 0
    %1093 = vmatprep.subr.bf16.mxu0 0
    %1094 = vmatpush2.bf16.msra.mxu0 0
    %1095 = vmatprep.subr.bf16.mxu0 0
    %1096 = vmatpush2.bf16.msra.mxu0 0
    %1097 = vmatprep.subr.bf16.mxu0 0
    %1098 = vmatpush2.bf16.msra.mxu0 0
    %1099 = vmatprep.subr.bf16.mxu0 0
    %1100 = vmatpush2.bf16.msra.mxu0 0
    %1101 = vmatprep.subr.bf16.mxu0 0
    %1102 = vmatpush2.bf16.msra.mxu0 0
    %1103 = vmatprep.subr.bf16.mxu0 0
    %1104 = vmatpush2.bf16.msra.mxu0 0
    %1105 = vmatprep.mubr.bf16.mxu0 0
    %1106 = vmatmul.mubr.bf16.gmra.mxu0 %v1072
    %v1107 = vpop.f32.mrf.mxu0
    %v1108 = vadd.f32 0.0, %v1107
    %v1109 = vpop.f32.mrf.mxu0
    %v1110 = vadd.f32 0.0, %v1109
    %v1111 = vpop.f32.mrf.mxu0
    %v1112 = vpop.f32.mrf.mxu0
    %1113 = vdwg.mxu0
    %1114 = vmatprep.subr.bf16.mxu0 %v485
    %1115 = vmatpush1.bf16.msra.mxu0 %v484
    %1116 = vmatprep.subr.bf16.mxu0 %v481
    %1117 = vmatpush1.bf16.msra.mxu0 %v480
    %1118 = vmatprep.subr.bf16.mxu0 %v477
    %1119 = vmatpush1.bf16.msra.mxu0 %v476
    %1120 = vmatprep.subr.bf16.mxu0 %v473
    %1121 = vmatpush1.bf16.msra.mxu0 %v472
    %1122 = vmatprep.subr.bf16.mxu0 %v469
    %1123 = vmatpush1.bf16.msra.mxu0 %v468
    %1124 = vmatprep.subr.bf16.mxu0 %v465
    %1125 = vmatpush1.bf16.msra.mxu0 %v464
    %1126 = vmatprep.subr.bf16.mxu0 %v461
    %1127 = vmatpush1.bf16.msra.mxu0 %v460
    %1128 = vmatprep.subr.bf16.mxu0 %v457
    %1129 = vmatpush1.bf16.msra.mxu0 %v456
    %1130 = vmatprep.subr.bf16.mxu0 0
    %1131 = vmatpush2.bf16.msra.mxu0 0
    %1132 = vmatprep.subr.bf16.mxu0 0
    %1133 = vmatpush2.bf16.msra.mxu0 0
    %1134 = vmatprep.subr.bf16.mxu0 0
    %1135 = vmatpush2.bf16.msra.mxu0 0
    %1136 = vmatprep.subr.bf16.mxu0 0
    %1137 = vmatpush2.bf16.msra.mxu0 0
    %1138 = vmatprep.subr.bf16.mxu0 0
    %1139 = vmatpush2.bf16.msra.mxu0 0
    %1140 = vmatprep.subr.bf16.mxu0 0
    %1141 = vmatpush2.bf16.msra.mxu0 0
    %1142 = vmatprep.subr.bf16.mxu0 0
    %1143 = vmatpush2.bf16.msra.mxu0 0
    %1144 = vmatprep.subr.bf16.mxu0 0
    %1145 = vmatpush2.bf16.msra.mxu0 0
    %1146 = vmatprep.mubr.bf16.mxu0 0
    %1147 = vmatmul.mubr.bf16.gmra.mxu0 %v1072
    %v1148 = vpop.f32.mrf.mxu0
    %v1149 = vadd.f32 0.0, %v1148
    %v1150 = vpop.f32.mrf.mxu0
    %v1151 = vadd.f32 0.0, %v1150
    %v1152 = vpop.f32.mrf.mxu0
    %v1153 = vpop.f32.mrf.mxu0
    %1154 = vdwg.mxu0
    %v1155 = vadd.f32 %v268, %v1108
    %v1156 = vadd.f32 %v270, %v1110
    %v1157 = vadd.f32 %v341, %v1149
    %v1158 = vadd.f32 %v343, %v1151
    %v1159 = vxor.u32 %v1155, 2147483648
    %v1160 = vmul.f32 %v1159, 1.442695
    %v1161 = vpow.pop %v1160
    %v1162 = vadd.f32 %v1161, 1.0
    %v1163 = vrcp.pop %v1162
    %v1164 = vmul.f32 1.0, %v1163
    %v1165 = vxor.u32 %v1156, 2147483648
    %v1166 = vmul.f32 %v1165, 1.442695
    %v1167 = vpow.pop %v1166
    %v1168 = vadd.f32 %v1167, 1.0
    %v1169 = vrcp.pop %v1168
    %v1170 = vmul.f32 1.0, %v1169
    %v1171 = vtanh.pop %v1157
    %v1172 = vxor.u32 %v1158, 2147483648
    %v1173 = vmul.f32 %v1172, 1.442695
    %v1174 = vpow.pop %v1173
    %v1175 = vadd.f32 %v1174, 1.0
    %v1176 = vrcp.pop %v1175
    %v1177 = vmul.f32 1.0, %v1176
    %v1178 = vmul.f32 %v1170, %v1069
    %v1179 = vmul.f32 %v1164, %v1171
    %v1180 = vadd.f32 %v1178, %v1179
    %v1181 = vtanh.pop %v1180
    %v1182 = vmul.f32 %v1177, %v1181
    %v1183 = vpack.c.bf16 %v1182, %v1182
    %1184 = vmatprep.subr.bf16.mxu0 %v483
    %1185 = vmatpush1.bf16.msra.mxu0 %v482
    %1186 = vmatprep.subr.bf16.mxu0 %v479
    %1187 = vmatpush1.bf16.msra.mxu0 %v478
    %1188 = vmatprep.subr.bf16.mxu0 %v475
    %1189 = vmatpush1.bf16.msra.mxu0 %v474
    %1190 = vmatprep.subr.bf16.mxu0 %v471
    %1191 = vmatpush1.bf16.msra.mxu0 %v470
    %1192 = vmatprep.subr.bf16.mxu0 %v467
    %1193 = vmatpush1.bf16.msra.mxu0 %v466
    %1194 = vmatprep.subr.bf16.mxu0 %v463
    %1195 = vmatpush1.bf16.msra.mxu0 %v462
    %1196 = vmatprep.subr.bf16.mxu0 %v459
    %1197 = vmatpush1.bf16.msra.mxu0 %v458
    %1198 = vmatprep.subr.bf16.mxu0 %v455
    %1199 = vmatpush1.bf16.msra.mxu0 %v454
    %1200 = vmatprep.subr.bf16.mxu0 0
    %1201 = vmatpush2.bf16.msra.mxu0 0
    %1202 = vmatprep.subr.bf16.mxu0 0
    %1203 = vmatpush2.bf16.msra.mxu0 0
    %1204 = vmatprep.subr.bf16.mxu0 0
    %1205 = vmatpush2.bf16.msra.mxu0 0
    %1206 = vmatprep.subr.bf16.mxu0 0
    %1207 = vmatpush2.bf16.msra.mxu0 0
    %1208 = vmatprep.subr.bf16.mxu0 0
    %1209 = vmatpush2.bf16.msra.mxu0 0
    %1210 = vmatprep.subr.bf16.mxu0 0
    %1211 = vmatpush2.bf16.msra.mxu0 0
    %1212 = vmatprep.subr.bf16.mxu0 0
    %1213 = vmatpush2.bf16.msra.mxu0 0
    %1214 = vmatprep.subr.bf16.mxu0 0
    %1215 = vmatpush2.bf16.msra.mxu0 0
    %1216 = vmatprep.mubr.bf16.mxu0 0
    %1217 = vmatmul.mubr.bf16.gmra.mxu0 %v1183
    %v1218 = vpop.f32.mrf.mxu0
    %v1219 = vadd.f32 0.0, %v1218
    %v1220 = vpop.f32.mrf.mxu0
    %v1221 = vadd.f32 0.0, %v1220
    %v1222 = vpop.f32.mrf.mxu0
    %v1223 = vpop.f32.mrf.mxu0
    %1224 = vdwg.mxu0
    %1225 = vmatprep.subr.bf16.mxu0 %v485
    %1226 = vmatpush1.bf16.msra.mxu0 %v484
    %1227 = vmatprep.subr.bf16.mxu0 %v481
    %1228 = vmatpush1.bf16.msra.mxu0 %v480
    %1229 = vmatprep.subr.bf16.mxu0 %v477
    %1230 = vmatpush1.bf16.msra.mxu0 %v476
    %1231 = vmatprep.subr.bf16.mxu0 %v473
    %1232 = vmatpush1.bf16.msra.mxu0 %v472
    %1233 = vmatprep.subr.bf16.mxu0 %v469
    %1234 = vmatpush1.bf16.msra.mxu0 %v468
    %1235 = vmatprep.subr.bf16.mxu0 %v465
    %1236 = vmatpush1.bf16.msra.mxu0 %v464
    %1237 = vmatprep.subr.bf16.mxu0 %v461
    %1238 = vmatpush1.bf16.msra.mxu0 %v460
    %1239 = vmatprep.subr.bf16.mxu0 %v457
    %1240 = vmatpush1.bf16.msra.mxu0 %v456
    %1241 = vmatprep.subr.bf16.mxu0 0
    %1242 = vmatpush2.bf16.msra.mxu0 0
    %1243 = vmatprep.subr.bf16.mxu0 0
    %1244 = vmatpush2.bf16.msra.mxu0 0
    %1245 = vmatprep.subr.bf16.mxu0 0
    %1246 = vmatpush2.bf16.msra.mxu0 0
    %1247 = vmatprep.subr.bf16.mxu0 0
    %1248 = vmatpush2.bf16.msra.mxu0 0
    %1249 = vmatprep.subr.bf16.mxu0 0
    %1250 = vmatpush2.bf16.msra.mxu0 0
    %1251 = vmatprep.subr.bf16.mxu0 0
    %1252 = vmatpush2.bf16.msra.mxu0 0
    %1253 = vmatprep.subr.bf16.mxu0 0
    %1254 = vmatpush2.bf16.msra.mxu0 0
    %1255 = vmatprep.subr.bf16.mxu0 0
    %1256 = vmatpush2.bf16.msra.mxu0 0
    %1257 = vmatprep.mubr.bf16.mxu0 0
    %1258 = vmatmul.mubr.bf16.gmra.mxu0 %v1183
    %v1259 = vpop.f32.mrf.mxu0
    %v1260 = vadd.f32 0.0, %v1259
    %v1261 = vpop.f32.mrf.mxu0
    %v1262 = vadd.f32 0.0, %v1261
    %v1263 = vpop.f32.mrf.mxu0
    %v1264 = vpop.f32.mrf.mxu0
    %1265 = vdwg.mxu0
    %v1266 = vadd.f32 %v274, %v1219
    %v1267 = vadd.f32 %v276, %v1221
    %v1268 = vadd.f32 %v347, %v1260
    %v1269 = vadd.f32 %v349, %v1262
    %v1270 = vxor.u32 %v1266, 2147483648
    %v1271 = vmul.f32 %v1270, 1.442695
    %v1272 = vpow.pop %v1271
    %v1273 = vadd.f32 %v1272, 1.0
    %v1274 = vrcp.pop %v1273
    %v1275 = vmul.f32 1.0, %v1274
    %v1276 = vxor.u32 %v1267, 2147483648
    %v1277 = vmul.f32 %v1276, 1.442695
    %v1278 = vpow.pop %v1277
    %v1279 = vadd.f32 %v1278, 1.0
    %v1280 = vrcp.pop %v1279
    %v1281 = vmul.f32 1.0, %v1280
    %v1282 = vtanh.pop %v1268
    %v1283 = vxor.u32 %v1269, 2147483648
    %v1284 = vmul.f32 %v1283, 1.442695
    %v1285 = vpow.pop %v1284
    %v1286 = vadd.f32 %v1285, 1.0
    %v1287 = vrcp.pop %v1286
    %v1288 = vmul.f32 1.0, %v1287
    %v1289 = vmul.f32 %v1281, %v1180
    %v1290 = vmul.f32 %v1275, %v1282
    %v1291 = vadd.f32 %v1289, %v1290
    %v1292 = vtanh.pop %v1291
    %v1293 = vmul.f32 %v1288, %v1292
    %v1294 = vpack.c.bf16 %v1293, %v1293
    %1295 = vmatprep.subr.bf16.mxu0 %v483
    %1296 = vmatpush1.bf16.msra.mxu0 %v482
    %1297 = vmatprep.subr.bf16.mxu0 %v479
    %1298 = vmatpush1.bf16.msra.mxu0 %v478
    %1299 = vmatprep.subr.bf16.mxu0 %v475
    %1300 = vmatpush1.bf16.msra.mxu0 %v474
    %1301 = vmatprep.subr.bf16.mxu0 %v471
    %1302 = vmatpush1.bf16.msra.mxu0 %v470
    %1303 = vmatprep.subr.bf16.mxu0 %v467
    %1304 = vmatpush1.bf16.msra.mxu0 %v466
    %1305 = vmatprep.subr.bf16.mxu0 %v463
    %1306 = vmatpush1.bf16.msra.mxu0 %v462
    %1307 = vmatprep.subr.bf16.mxu0 %v459
    %1308 = vmatpush1.bf16.msra.mxu0 %v458
    %1309 = vmatprep.subr.bf16.mxu0 %v455
    %1310 = vmatpush1.bf16.msra.mxu0 %v454
    %1311 = vmatprep.subr.bf16.mxu0 0
    %1312 = vmatpush2.bf16.msra.mxu0 0
    %1313 = vmatprep.subr.bf16.mxu0 0
    %1314 = vmatpush2.bf16.msra.mxu0 0
    %1315 = vmatprep.subr.bf16.mxu0 0
    %1316 = vmatpush2.bf16.msra.mxu0 0
    %1317 = vmatprep.subr.bf16.mxu0 0
    %1318 = vmatpush2.bf16.msra.mxu0 0
    %1319 = vmatprep.subr.bf16.mxu0 0
    %1320 = vmatpush2.bf16.msra.mxu0 0
    %1321 = vmatprep.subr.bf16.mxu0 0
    %1322 = vmatpush2.bf16.msra.mxu0 0
    %1323 = vmatprep.subr.bf16.mxu0 0
    %1324 = vmatpush2.bf16.msra.mxu0 0
    %1325 = vmatprep.subr.bf16.mxu0 0
    %1326 = vmatpush2.bf16.msra.mxu0 0
    %1327 = vmatprep.mubr.bf16.mxu0 0
    %1328 = vmatmul.mubr.bf16.gmra.mxu0 %v1294
    %v1329 = vpop.f32.mrf.mxu0
    %v1330 = vadd.f32 0.0, %v1329
    %v1331 = vpop.f32.mrf.mxu0
    %v1332 = vadd.f32 0.0, %v1331
    %v1333 = vpop.f32.mrf.mxu0
    %v1334 = vpop.f32.mrf.mxu0
    %1335 = vdwg.mxu0
    %1336 = vmatprep.subr.bf16.mxu0 %v485
    %1337 = vmatpush1.bf16.msra.mxu0 %v484
    %1338 = vmatprep.subr.bf16.mxu0 %v481
    %1339 = vmatpush1.bf16.msra.mxu0 %v480
    %1340 = vmatprep.subr.bf16.mxu0 %v477
    %1341 = vmatpush1.bf16.msra.mxu0 %v476
    %1342 = vmatprep.subr.bf16.mxu0 %v473
    %1343 = vmatpush1.bf16.msra.mxu0 %v472
    %1344 = vmatprep.subr.bf16.mxu0 %v469
    %1345 = vmatpush1.bf16.msra.mxu0 %v468
    %1346 = vmatprep.subr.bf16.mxu0 %v465
    %1347 = vmatpush1.bf16.msra.mxu0 %v464
    %1348 = vmatprep.subr.bf16.mxu0 %v461
    %1349 = vmatpush1.bf16.msra.mxu0 %v460
    %1350 = vmatprep.subr.bf16.mxu0 %v457
    %1351 = vmatpush1.bf16.msra.mxu0 %v456
    %1352 = vmatprep.subr.bf16.mxu0 0
    %1353 = vmatpush2.bf16.msra.mxu0 0
    %1354 = vmatprep.subr.bf16.mxu0 0
    %1355 = vmatpush2.bf16.msra.mxu0 0
    %1356 = vmatprep.subr.bf16.mxu0 0
    %1357 = vmatpush2.bf16.msra.mxu0 0
    %1358 = vmatprep.subr.bf16.mxu0 0
    %1359 = vmatpush2.bf16.msra.mxu0 0
    %1360 = vmatprep.subr.bf16.mxu0 0
    %1361 = vmatpush2.bf16.msra.mxu0 0
    %1362 = vmatprep.subr.bf16.mxu0 0
    %1363 = vmatpush2.bf16.msra.mxu0 0
    %1364 = vmatprep.subr.bf16.mxu0 0
    %1365 = vmatpush2.bf16.msra.mxu0 0
    %1366 = vmatprep.subr.bf16.mxu0 0
    %1367 = vmatpush2.bf16.msra.mxu0 0
    %1368 = vmatprep.mubr.bf16.mxu0 0
    %1369 = vmatmul.mubr.bf16.gmra.mxu0 %v1294
    %v1370 = vpop.f32.mrf.mxu0
    %v1371 = vadd.f32 0.0, %v1370
    %v1372 = vpop.f32.mrf.mxu0
    %v1373 = vadd.f32 0.0, %v1372
    %v1374 = vpop.f32.mrf.mxu0
    %v1375 = vpop.f32.mrf.mxu0
    %1376 = vdwg.mxu0
    %v1377 = vadd.f32 %v278, %v1330
    %v1378 = vadd.f32 %v280, %v1332
    %v1379 = vadd.f32 %v351, %v1371
    %v1380 = vadd.f32 %v353, %v1373
    %v1381 = vxor.u32 %v1377, 2147483648
    %v1382 = vmul.f32 %v1381, 1.442695
    %v1383 = vpow.pop %v1382
    %v1384 = vadd.f32 %v1383, 1.0
    %v1385 = vrcp.pop %v1384
    %v1386 = vmul.f32 1.0, %v1385
    %v1387 = vxor.u32 %v1378, 2147483648
    %v1388 = vmul.f32 %v1387, 1.442695
    %v1389 = vpow.pop %v1388
    %v1390 = vadd.f32 %v1389, 1.0
    %v1391 = vrcp.pop %v1390
    %v1392 = vmul.f32 1.0, %v1391
    %v1393 = vtanh.pop %v1379
    %v1394 = vxor.u32 %v1380, 2147483648
    %v1395 = vmul.f32 %v1394, 1.442695
    %v1396 = vpow.pop %v1395
    %v1397 = vadd.f32 %v1396, 1.0
    %v1398 = vrcp.pop %v1397
    %v1399 = vmul.f32 1.0, %v1398
    %v1400 = vmul.f32 %v1392, %v1291
    %v1401 = vmul.f32 %v1386, %v1393
    %v1402 = vadd.f32 %v1400, %v1401
    %v1403 = vtanh.pop %v1402
    %v1404 = vmul.f32 %v1399, %v1403
    %1405 = vst [vmem:[#allocation2] sm:$0xff] %v1404
    %1406 = vst [vmem:[#allocation3] sm:$0xff] %v1402
    %1407 = vst [vmem:[#allocation10] sm:$0xff] %v1404
    // Predicated region
    $region34: #{tpu_custom_call.1} parent=1 // pred_check
      _
    $region35: #{tpu_custom_call.1} parent=1 // pred_check_branch
      %1409 = sbr.rel (0) target = $region37
    $region36: #{tpu_custom_call.1} parent=1 // pred_region
      %s1411 = ssub.s32 128, 128
      %1412 = vsyncadd [#allocation6], %s1411
      %s1414 = sshll.u32 [#allocation10], 4
      %s1415 = int_to_ptr.vmem [resolvable:$true] %s1414
      %1417 = dma.vmem_to_hbm [thread:$0]  %s1415, 128, %s4, [#allocation6]
    $region37: #{tpu_custom_call.1} parent=1 // pred_fallthru
      _
    // Predicated region
    $region38: #{tpu_custom_call.1} parent=1 // pred_check
      _
    $region39: #{tpu_custom_call.1} parent=1 // pred_check_branch
      %1419 = sbr.rel (0) target = $region41
    $region40: #{tpu_custom_call.1} parent=1 // pred_region
      %1420 = dma.done [#allocation6], 128
    $region41: #{tpu_custom_call.1} parent=1 // pred_fallthru
      _
    %1421 = vsyncpa [#allocation5], 1
    %1422 = vsyncpa [#allocation8], 1
    %1423 = vsyncpa [#allocation6], 1

</llo_original>
